<compile_context>
chip_gen: v7x
topology: tpu7x:2x2x1
jax: 0.10.0
libtpu: 0.0.40
codegen_flags: <defaults>
</compile_context>

<pallas_src>
import jax
import jax.numpy as jnp
from jax import lax
from jax.experimental import pallas as pl
from jax.experimental.pallas import tpu as pltpu


def make_fablock_kernel(B, C, H, W):
    N = H * W

    def row_of(v, b):
        # (1, N) row b of a (B, N) value via mask + sublane reduce
        # (avoids slicing traced values; pure VPU/XLU work).
        ri = lax.broadcasted_iota(jnp.int32, v.shape, 0)
        return jnp.sum(jnp.where(ri == b, v, 0.0), axis=0, keepdims=True)

    def kernel(x_ref, w1_ref, fc1_ref, fc2_ref, w2t_ref, w3_ref, w4_ref, scal_ref,
               out_ref, att_ref, logit_scr, xyz_scr):
        # x_ref is the whole batch, channel-flattened: (B*C, N) f32 in VMEM.
        w1 = w1_ref[...]                                          # (C, 1)

        # ---- conv1 (1x1, C->1): per-batch C-contraction (broadcast-mul + sublane reduce) ----
        for b in range(B):
            x_b = x_ref[pl.ds(b * C, C), :]                       # (C, N)
            logit_scr[pl.ds(b, 1), :] = jnp.sum(w1 * x_b, axis=0, keepdims=True)

        # ---- spatial softmax, batched over B (fills the sublane axis) ----
        logits = logit_scr[...]                                   # (B, N)
        m = jnp.max(logits, axis=1, keepdims=True)
        p = jnp.exp(logits - m)
        attn = p / jnp.sum(p, axis=1, keepdims=True)              # (B, N)

        # ---- channel descriptor, column-major (C, B): chan[:, b] = x_b @ attn_b ----
        lane_cb = lax.broadcasted_iota(jnp.int32, (C, B), 1)
        chan = jnp.zeros((C, B), jnp.float32)
        for b in range(B):
            x_b = x_ref[pl.ds(b * C, C), :]
            a_b = row_of(attn, b)                                 # (1, N)
            col = jnp.sum(x_b * a_b, axis=1, keepdims=True)       # (C, 1)
            chan = chan + jnp.where(lane_cb == b, col, 0.0)

        # ---- SE channel gate: real MXU matmuls with B columns ----
        h = jnp.maximum(
            jnp.dot(fc1_ref[...], chan, preferred_element_type=jnp.float32), 0.0)   # (C//r, B)
        cgate = jax.nn.sigmoid(
            jnp.dot(fc2_ref[...], h, preferred_element_type=jnp.float32))           # (C, B)

        # Fused conv2 -> channel gate -> conv3:  veff[:, b] = W2^T (w3 .* cgate[:, b])
        veff = jnp.dot(w2t_ref[...], w3_ref[...] * cgate,
                       preferred_element_type=jnp.float32)                          # (C, B)

        # ---- x_y_z[b, n] = sum_c veff[c, b] * x[b, c, n] ----
        for b in range(B):
            x_b = x_ref[pl.ds(b * C, C), :]
            v_b = jnp.sum(jnp.where(lane_cb == b, veff, 0.0),
                          axis=1, keepdims=True)                  # (C, 1)
            xyz_scr[pl.ds(b, 1), :] = jnp.sum(v_b * x_b, axis=0, keepdims=True)

        xyz = xyz_scr[...]                                        # (B, N)

        # ---- conv4: 3x3 / pad=1 cross-correlation, factored horizontal + vertical ----
        flat = lax.broadcasted_iota(jnp.int32, (B, N), 1)
        colI = flat % W
        left_ok = colI >= 1            # tap at column j-1 is valid
        right_ok = colI < (W - 1)      # tap at column j+1 is valid
        top_ok = flat >= W             # tap at row i-1 is valid
        bot_ok = flat < (H - 1) * W    # tap at row i+1 is valid

        h_m1 = jnp.where(left_ok, pltpu.roll(xyz, shift=1, axis=1), 0.0)       # xyz[., n-1]
        h_p1 = jnp.where(right_ok, pltpu.roll(xyz, shift=N - 1, axis=1), 0.0)  # xyz[., n+1]

        r0 = w4_ref[0] * h_m1 + w4_ref[1] * xyz + w4_ref[2] * h_p1   # kernel row 0 (di=-1)
        r1 = w4_ref[3] * h_m1 + w4_ref[4] * xyz + w4_ref[5] * h_p1   # kernel row 1 (di= 0)
        r2 = w4_ref[6] * h_m1 + w4_ref[7] * xyz + w4_ref[8] * h_p1   # kernel row 2 (di=+1)

        zpre = (jnp.where(top_ok, pltpu.roll(r0, shift=W, axis=1), 0.0)
                + r1
                + jnp.where(bot_ok, pltpu.roll(r2, shift=N - W, axis=1), 0.0))

        # ---- BatchNorm2d(1), training-mode batch statistics (exact two-pass) ----
        # TODO(synk): running_mean / running_var momentum buffer updates are not
        # modeled; only the forward normalization with batch statistics is done.
        cnt = jnp.float32(B * N)
        mean = jnp.sum(zpre) / cnt
        ctr = zpre - mean
        var = jnp.sum(ctr * ctr) / cnt
        inv_std = lax.rsqrt(var + jnp.float32(1e-5))

        gamma = scal_ref[0]
        bn_w = scal_ref[1]
        bn_b = scal_ref[2]
        z = jax.nn.sigmoid(ctr * (inv_std * bn_w) + bn_b)
        gz = gamma * (xyz * z)                                    # gamma * x_y_z, (B, N)

        # ---- residual: out = gamma * x_y_z + x (broadcast over channels) ----
        for b in range(B):
            out_ref[pl.ds(b * C, C), :] = x_ref[pl.ds(b * C, C), :] + row_of(gz, b)

        # ---- attention_outs: per-batch min-max normalization of gamma * x_y_z ----
        mn = jnp.min(gz, axis=1, keepdims=True)
        mx = jnp.max(gz, axis=1, keepdims=True)
        rng = mx - mn
        rng = jnp.where(rng == 0.0, jnp.float32(1e-5), rng)
        att_ref[...] = (gz - mn) / rng

    return kernel


def fablock_forward(x, params):
    B, C, H, W = x.shape
    N = H * W
    x2d = x.astype(jnp.float32).reshape(B * C, N)

    # Weight layout prep (cheap, one-time): column vectors / transposes so the
    # kernel needs no in-kernel transposes.
    w1_col = params["w1"].reshape(C, 1).astype(jnp.float32)
    w3_col = params["w3"].reshape(C, 1).astype(jnp.float32)
    w2t = params["w2"].T.astype(jnp.float32)                     # W2^T, (C, C)
    fc1 = params["fc1"].astype(jnp.float32)                      # (C//r, C)
    fc2 = params["fc2"].astype(jnp.float32)                      # (C, C//r)
    w4_flat = params["w4"].reshape(9).astype(jnp.float32)
    scal = jnp.stack([jnp.asarray(params["gamma"], jnp.float32),
                      jnp.asarray(params["bn_w"], jnp.float32),
                      jnp.asarray(params["bn_b"], jnp.float32)])

    vmem = pl.BlockSpec(memory_space=pltpu.MemorySpace.VMEM)
    smem = pl.BlockSpec(memory_space=pltpu.MemorySpace.SMEM)

    out2d, att2d = pl.pallas_call(
        make_fablock_kernel(B, C, H, W),
        in_specs=[vmem,   # x (B*C, N)
                  vmem,   # conv1 weight as (C, 1) column
                  vmem,   # channel_fc[0] (C//r, C)
                  vmem,   # channel_fc[2] (C, C//r)
                  vmem,   # conv2 weight transposed (C, C)
                  vmem,   # conv3 weight as (C, 1) column
                  smem,   # conv4 3x3 taps, flat (9,)
                  smem],  # [gamma, bn_w, bn_b]
        out_specs=(vmem, vmem),
        out_shape=(
            jax.ShapeDtypeStruct((B * C, N), jnp.float32),        # residual output
            jax.ShapeDtypeStruct((B, N), jnp.float32),            # attention_outs
        ),
        scratch_shapes=[
            pltpu.VMEM((B, N), jnp.float32),                      # conv1 logits
            pltpu.VMEM((B, N), jnp.float32),                      # fused x_y_z
        ],
    )(x2d, w1_col, fc1, fc2, w2t, w3_col, w4_flat, scal)

    return out2d.reshape(B, C, H, W), att2d.reshape(B, 1, H, W)


def fablock_reference(x, params):
    """Pure-JAX reference mirroring the PyTorch forward (for validation)."""
    B, C, H, W = x.shape
    w1 = params["w1"][0]
    fc1, fc2 = params["fc1"], params["fc2"]
    w2, w3 = params["w2"], params["w3"][0]
    w4 = params["w4"]
    gamma, bn_w, bn_b = params["gamma"], params["bn_w"], params["bn_b"]

    y = jnp.einsum('bchw,c->bhw', x, w1).reshape(B, 1, -1)
    y = jax.nn.softmax(y, axis=-1)
    y = jnp.transpose(y, (0, 2, 1))
    ych = jnp.matmul(x.reshape(B, C, -1), y).reshape(B, C)
    hdd = jnp.maximum(ych @ fc1.T, 0.0)
    sig = jax.nn.sigmoid(hdd @ fc2.T)[:, :, None, None]
    x_y = jnp.einsum('oc,bchw->bohw', w2, x) * sig
    x_y_z = jnp.einsum('c,bchw->bhw', w3, x_y)[:, None, :, :]
    z = lax.conv_general_dilated(x_y_z, w4.reshape(1, 1, 3, 3), (1, 1), 'SAME',
                                 dimension_numbers=('NCHW', 'OIHW', 'NCHW'))
    mean = jnp.mean(z)
    var = jnp.mean((z - mean) ** 2)
    z = jax.nn.sigmoid((z - mean) / jnp.sqrt(var + 1e-5) * bn_w + bn_b)
    x_y_z = x_y_z * z
    out = gamma * x_y_z + x
    gz = (gamma * x_y_z).reshape(B, -1)
    mn = gz.min(axis=1, keepdims=True)
    mx = gz.max(axis=1, keepdims=True)
    rng = jnp.where(mx - mn == 0.0, 1e-5, mx - mn)
    att = ((gz - mn) / rng).reshape(B, 1, H, W)
    return out, att


if __name__ == "__main__":
    B, C, H, W = 2, 32, 16, 16
    reduction = 8
    key = jax.random.PRNGKey(0)
    ks = jax.random.split(key, 7)
    params = {
        "w1": 0.1 * jax.random.normal(ks[0], (1, C), jnp.float32),
        "fc1": 0.1 * jax.random.normal(ks[1], (C // reduction, C), jnp.float32),
        "fc2": 0.1 * jax.random.normal(ks[2], (C, C // reduction), jnp.float32),
        "w2": 0.1 * jax.random.normal(ks[3], (C, C), jnp.float32),
        "w3": 0.1 * jax.random.normal(ks[4], (1, C), jnp.float32),
        "w4": 0.1 * jax.random.normal(ks[5], (3, 3), jnp.float32),
        # PyTorch inits gamma to 0 (which makes out == x trivially); use a nonzero
        # deterministic value so the full path is exercised.
        "gamma": 0.5,
        "bn_w": 1.0,
        "bn_b": 0.0,
    }

    x = jax.random.normal(ks[6], (B, C, H, W), jnp.float32)

    out, att = fablock_forward(x, params)
    jax.block_until_ready((out, att))

    out_ref, att_ref = fablock_reference(x, params)
    assert jnp.allclose(out, out_ref, atol=2e-2, rtol=2e-2), "out mismatch"
    assert jnp.allclose(att, att_ref, atol=2e-2, rtol=2e-2), "attention_outs mismatch"

    print("KERNEL_OK")
</pallas_src>

<mosaic_0001>
module attributes {stable_mosaic.version = 11 : i64} {
  func.func @kernel(%arg0: memref<64x256xf32, #tpu.memory_space<vmem>>, %arg1: memref<32x1xf32, #tpu.memory_space<vmem>>, %arg2: memref<4x32xf32, #tpu.memory_space<vmem>>, %arg3: memref<32x4xf32, #tpu.memory_space<vmem>>, %arg4: memref<32x32xf32, #tpu.memory_space<vmem>>, %arg5: memref<32x1xf32, #tpu.memory_space<vmem>>, %arg6: memref<9xf32, #tpu.memory_space<smem>>, %arg7: memref<3xf32, #tpu.memory_space<smem>>, %arg8: memref<64x256xf32, #tpu.memory_space<vmem>>, %arg9: memref<2x256xf32, #tpu.memory_space<vmem>>, %arg10: memref<2x256xf32, #tpu.memory_space<vmem>>, %arg11: memref<2x256xf32, #tpu.memory_space<vmem>>) attributes {dimension_semantics = [], scalar_prefetch = 0 : i64, scratch_operands = 2 : i64, tpu.core_type = #tpu.core_type<tc>} {
    %c0 = arith.constant 0 : index
    %c0_0 = arith.constant 0 : index
    %0 = vector.load %arg1[%c0, %c0_0] : memref<32x1xf32, #tpu.memory_space<vmem>>, vector<32x1xf32>
    %c0_1 = arith.constant 0 : index
    %c0_2 = arith.constant 0 : index
    %1 = vector.load %arg0[%c0_1, %c0_2] : memref<64x256xf32, #tpu.memory_space<vmem>>, vector<32x256xf32>
    %2 = vector.broadcast %0 : vector<32x1xf32> to vector<32x256xf32>
    %3 = arith.mulf %2, %1 : vector<32x256xf32>
    %cst = arith.constant dense<0.000000e+00> : vector<256xf32>
    %4 = vector.multi_reduction <add>, %3, %cst [0] : vector<32x256xf32> to vector<256xf32>
    %5 = vector.shape_cast %4 : vector<256xf32> to vector<1x256xf32>
    %c0_3 = arith.constant 0 : index
    %c0_4 = arith.constant 0 : index
    %6 = vector.load %arg10[%c0_3, %c0_4] : memref<2x256xf32, #tpu.memory_space<vmem>>, vector<1x256xf32>
    tpu.vector_store %arg10[%c0_3, %c0_4], %5 {strides = array<i32>} : memref<2x256xf32, #tpu.memory_space<vmem>>, vector<1x256xf32>,
    %c32 = arith.constant 32 : index
    %c0_5 = arith.constant 0 : index
    %7 = vector.load %arg0[%c32, %c0_5] : memref<64x256xf32, #tpu.memory_space<vmem>>, vector<32x256xf32>
    %8 = vector.broadcast %0 : vector<32x1xf32> to vector<32x256xf32>
    %9 = arith.mulf %8, %7 : vector<32x256xf32>
    %cst_6 = arith.constant dense<0.000000e+00> : vector<256xf32>
    %10 = vector.multi_reduction <add>, %9, %cst_6 [0] : vector<32x256xf32> to vector<256xf32>
    %11 = vector.shape_cast %10 : vector<256xf32> to vector<1x256xf32>
    %c1 = arith.constant 1 : index
    %c0_7 = arith.constant 0 : index
    %12 = vector.load %arg10[%c1, %c0_7] : memref<2x256xf32, #tpu.memory_space<vmem>>, vector<1x256xf32>
    tpu.vector_store %arg10[%c1, %c0_7], %11 {strides = array<i32>} : memref<2x256xf32, #tpu.memory_space<vmem>>, vector<1x256xf32>,
    %c0_8 = arith.constant 0 : index
    %c0_9 = arith.constant 0 : index
    %13 = vector.load %arg10[%c0_8, %c0_9] : memref<2x256xf32, #tpu.memory_space<vmem>>, vector<2x256xf32>
    %cst_10 = arith.constant dense<0xFF800000> : vector<2xf32>
    %14 = vector.multi_reduction <maximumf>, %13, %cst_10 [1] : vector<2x256xf32> to vector<2xf32>
    %15 = vector.shape_cast %14 : vector<2xf32> to vector<2x1xf32>
    %16 = vector.broadcast %15 : vector<2x1xf32> to vector<2x256xf32>
    %17 = arith.subf %13, %16 : vector<2x256xf32>
    %18 = math.exp %17 : vector<2x256xf32>
    %cst_11 = arith.constant dense<0.000000e+00> : vector<2xf32>
    %19 = vector.multi_reduction <add>, %18, %cst_11 [1] : vector<2x256xf32> to vector<2xf32>
    %20 = vector.shape_cast %19 : vector<2xf32> to vector<2x1xf32>
    %21 = vector.broadcast %20 : vector<2x1xf32> to vector<2x256xf32>
    %22 = arith.divf %18, %21 : vector<2x256xf32>
    %23 = tpu.iota {dimensions = array<i32: 1>} : vector<32x2xi32>
    %cst_12 = arith.constant 0.000000e+00 : f32
    %24 = vector.broadcast %cst_12 : f32 to vector<32x2xf32>
    %c0_13 = arith.constant 0 : index
    %c0_14 = arith.constant 0 : index
    %25 = vector.load %arg0[%c0_13, %c0_14] : memref<64x256xf32, #tpu.memory_space<vmem>>, vector<32x256xf32>
    %26 = tpu.iota {dimensions = array<i32: 0>} : vector<2x256xi32>
    %c0_i32 = arith.constant 0 : i32
    %27 = vector.broadcast %c0_i32 : i32 to vector<2x256xi32>
    %28 = arith.cmpi eq, %26, %27 : vector<2x256xi32>
    %cst_15 = arith.constant 0.000000e+00 : f32
    %29 = vector.broadcast %cst_15 : f32 to vector<2x256xf32>
    %30 = arith.select %28, %22, %29 : vector<2x256xi1>, vector<2x256xf32>
    %cst_16 = arith.constant dense<0.000000e+00> : vector<256xf32>
    %31 = vector.multi_reduction <add>, %30, %cst_16 [0] : vector<2x256xf32> to vector<256xf32>
    %32 = vector.shape_cast %31 : vector<256xf32> to vector<1x256xf32>
    %33 = vector.broadcast %32 : vector<1x256xf32> to vector<32x256xf32>
    %34 = arith.mulf %25, %33 : vector<32x256xf32>
    %cst_17 = arith.constant dense<0.000000e+00> : vector<32xf32>
    %35 = vector.multi_reduction <add>, %34, %cst_17 [1] : vector<32x256xf32> to vector<32xf32>
    %36 = vector.shape_cast %35 : vector<32xf32> to vector<32x1xf32>
    %c0_i32_18 = arith.constant 0 : i32
    %37 = vector.broadcast %c0_i32_18 : i32 to vector<32x2xi32>
    %38 = arith.cmpi eq, %23, %37 : vector<32x2xi32>
    %cst_19 = arith.constant 0.000000e+00 : f32
    %39 = vector.shape_cast %36 : vector<32x1xf32> to vector<32x1xf32>
    %40 = vector.broadcast %39 : vector<32x1xf32> to vector<32x2xf32>
    %41 = vector.broadcast %cst_19 : f32 to vector<32x2xf32>
    %42 = arith.select %38, %40, %41 : vector<32x2xi1>, vector<32x2xf32>
    %43 = arith.addf %24, %42 : vector<32x2xf32>
    %c32_20 = arith.constant 32 : index
    %c0_21 = arith.constant 0 : index
    %44 = vector.load %arg0[%c32_20, %c0_21] : memref<64x256xf32, #tpu.memory_space<vmem>>, vector<32x256xf32>
    %45 = tpu.iota {dimensions = array<i32: 0>} : vector<2x256xi32>
    %c1_i32 = arith.constant 1 : i32
    %46 = vector.broadcast %c1_i32 : i32 to vector<2x256xi32>
    %47 = arith.cmpi eq, %45, %46 : vector<2x256xi32>
    %cst_22 = arith.constant 0.000000e+00 : f32
    %48 = vector.broadcast %cst_22 : f32 to vector<2x256xf32>
    %49 = arith.select %47, %22, %48 : vector<2x256xi1>, vector<2x256xf32>
    %cst_23 = arith.constant dense<0.000000e+00> : vector<256xf32>
    %50 = vector.multi_reduction <add>, %49, %cst_23 [0] : vector<2x256xf32> to vector<256xf32>
    %51 = vector.shape_cast %50 : vector<256xf32> to vector<1x256xf32>
    %52 = vector.broadcast %51 : vector<1x256xf32> to vector<32x256xf32>
    %53 = arith.mulf %44, %52 : vector<32x256xf32>
    %cst_24 = arith.constant dense<0.000000e+00> : vector<32xf32>
    %54 = vector.multi_reduction <add>, %53, %cst_24 [1] : vector<32x256xf32> to vector<32xf32>
    %55 = vector.shape_cast %54 : vector<32xf32> to vector<32x1xf32>
    %c1_i32_25 = arith.constant 1 : i32
    %56 = vector.broadcast %c1_i32_25 : i32 to vector<32x2xi32>
    %57 = arith.cmpi eq, %23, %56 : vector<32x2xi32>
    %cst_26 = arith.constant 0.000000e+00 : f32
    %58 = vector.shape_cast %55 : vector<32x1xf32> to vector<32x1xf32>
    %59 = vector.broadcast %58 : vector<32x1xf32> to vector<32x2xf32>
    %60 = vector.broadcast %cst_26 : f32 to vector<32x2xf32>
    %61 = arith.select %57, %59, %60 : vector<32x2xi1>, vector<32x2xf32>
    %62 = arith.addf %43, %61 : vector<32x2xf32>
    %c0_27 = arith.constant 0 : index
    %c0_28 = arith.constant 0 : index
    %63 = vector.load %arg2[%c0_27, %c0_28] : memref<4x32xf32, #tpu.memory_space<vmem>>, vector<4x32xf32>
    %cst_29 = arith.constant dense<0.000000e+00> : vector<4x2xf32>
    %64 = tpu.matmul %63, %62, %cst_29 {dimension_numbers = #tpu.dot_dimension_numbers<[1], [0], [0], [1], [0, 0, 1, 1], [], []>} : vector<4x32xf32>, vector<32x2xf32>, vector<4x2xf32> -> vector<4x2xf32>
    %cst_30 = arith.constant 0.000000e+00 : f32
    %65 = vector.broadcast %cst_30 : f32 to vector<4x2xf32>
    %66 = arith.maximumf %64, %65 : vector<4x2xf32>
    %c0_31 = arith.constant 0 : index
    %c0_32 = arith.constant 0 : index
    %67 = vector.load %arg3[%c0_31, %c0_32] : memref<32x4xf32, #tpu.memory_space<vmem>>, vector<32x4xf32>
    %cst_33 = arith.constant dense<0.000000e+00> : vector<32x2xf32>
    %68 = tpu.matmul %67, %66, %cst_33 {dimension_numbers = #tpu.dot_dimension_numbers<[1], [0], [0], [1], [0, 0, 1, 1], [], []>} : vector<32x4xf32>, vector<4x2xf32>, vector<32x2xf32> -> vector<32x2xf32>
    %69 = arith.negf %68 : vector<32x2xf32>
    %70 = math.exp %69 : vector<32x2xf32>
    %cst_34 = arith.constant 1.000000e+00 : f32
    %71 = vector.broadcast %cst_34 : f32 to vector<32x2xf32>
    %72 = arith.addf %71, %70 : vector<32x2xf32>
    %73 = arith.divf %71, %72 : vector<32x2xf32>
    %c0_35 = arith.constant 0 : index
    %c0_36 = arith.constant 0 : index
    %74 = vector.load %arg4[%c0_35, %c0_36] : memref<32x32xf32, #tpu.memory_space<vmem>>, vector<32x32xf32>
    %c0_37 = arith.constant 0 : index
    %c0_38 = arith.constant 0 : index
    %75 = vector.load %arg5[%c0_37, %c0_38] : memref<32x1xf32, #tpu.memory_space<vmem>>, vector<32x1xf32>
    %76 = vector.broadcast %75 : vector<32x1xf32> to vector<32x2xf32>
    %77 = arith.mulf %76, %73 : vector<32x2xf32>
    %cst_39 = arith.constant dense<0.000000e+00> : vector<32x2xf32>
    %78 = tpu.matmul %74, %77, %cst_39 {dimension_numbers = #tpu.dot_dimension_numbers<[1], [0], [0], [1], [0, 0, 1, 1], [], []>} : vector<32x32xf32>, vector<32x2xf32>, vector<32x2xf32> -> vector<32x2xf32>
    %c0_40 = arith.constant 0 : index
    %c0_41 = arith.constant 0 : index
    %79 = vector.load %arg0[%c0_40, %c0_41] : memref<64x256xf32, #tpu.memory_space<vmem>>, vector<32x256xf32>
    %c0_i32_42 = arith.constant 0 : i32
    %80 = vector.broadcast %c0_i32_42 : i32 to vector<32x2xi32>
    %81 = arith.cmpi eq, %23, %80 : vector<32x2xi32>
    %cst_43 = arith.constant 0.000000e+00 : f32
    %82 = vector.broadcast %cst_43 : f32 to vector<32x2xf32>
    %83 = arith.select %81, %78, %82 : vector<32x2xi1>, vector<32x2xf32>
    %cst_44 = arith.constant dense<0.000000e+00> : vector<32xf32>
    %84 = vector.multi_reduction <add>, %83, %cst_44 [1] : vector<32x2xf32> to vector<32xf32>
    %85 = vector.shape_cast %84 : vector<32xf32> to vector<32x1xf32>
    %86 = vector.broadcast %85 : vector<32x1xf32> to vector<32x256xf32>
    %87 = arith.mulf %86, %79 : vector<32x256xf32>
    %cst_45 = arith.constant dense<0.000000e+00> : vector<256xf32>
    %88 = vector.multi_reduction <add>, %87, %cst_45 [0] : vector<32x256xf32> to vector<256xf32>
    %89 = vector.shape_cast %88 : vector<256xf32> to vector<1x256xf32>
    %c0_46 = arith.constant 0 : index
    %c0_47 = arith.constant 0 : index
    %90 = vector.load %arg11[%c0_46, %c0_47] : memref<2x256xf32, #tpu.memory_space<vmem>>, vector<1x256xf32>
    tpu.vector_store %arg11[%c0_46, %c0_47], %89 {strides = array<i32>} : memref<2x256xf32, #tpu.memory_space<vmem>>, vector<1x256xf32>,
    %c32_48 = arith.constant 32 : index
    %c0_49 = arith.constant 0 : index
    %91 = vector.load %arg0[%c32_48, %c0_49] : memref<64x256xf32, #tpu.memory_space<vmem>>, vector<32x256xf32>
    %c1_i32_50 = arith.constant 1 : i32
    %92 = vector.broadcast %c1_i32_50 : i32 to vector<32x2xi32>
    %93 = arith.cmpi eq, %23, %92 : vector<32x2xi32>
    %cst_51 = arith.constant 0.000000e+00 : f32
    %94 = vector.broadcast %cst_51 : f32 to vector<32x2xf32>
    %95 = arith.select %93, %78, %94 : vector<32x2xi1>, vector<32x2xf32>
    %cst_52 = arith.constant dense<0.000000e+00> : vector<32xf32>
    %96 = vector.multi_reduction <add>, %95, %cst_52 [1] : vector<32x2xf32> to vector<32xf32>
    %97 = vector.shape_cast %96 : vector<32xf32> to vector<32x1xf32>
    %98 = vector.broadcast %97 : vector<32x1xf32> to vector<32x256xf32>
    %99 = arith.mulf %98, %91 : vector<32x256xf32>
    %cst_53 = arith.constant dense<0.000000e+00> : vector<256xf32>
    %100 = vector.multi_reduction <add>, %99, %cst_53 [0] : vector<32x256xf32> to vector<256xf32>
    %101 = vector.shape_cast %100 : vector<256xf32> to vector<1x256xf32>
    %c1_54 = arith.constant 1 : index
    %c0_55 = arith.constant 0 : index
    %102 = vector.load %arg11[%c1_54, %c0_55] : memref<2x256xf32, #tpu.memory_space<vmem>>, vector<1x256xf32>
    tpu.vector_store %arg11[%c1_54, %c0_55], %101 {strides = array<i32>} : memref<2x256xf32, #tpu.memory_space<vmem>>, vector<1x256xf32>,
    %c0_56 = arith.constant 0 : index
    %c0_57 = arith.constant 0 : index
    %103 = vector.load %arg11[%c0_56, %c0_57] : memref<2x256xf32, #tpu.memory_space<vmem>>, vector<2x256xf32>
    %104 = tpu.iota {dimensions = array<i32: 1>} : vector<2x256xi32>
    %c16_i32 = arith.constant 16 : i32
    %c0_i32_58 = arith.constant 0 : i32
    %105 = arith.cmpi eq, %c16_i32, %c0_i32_58 : i32
    %c1_i32_59 = arith.constant 1 : i32
    %106 = arith.select %105, %c1_i32_59, %c16_i32 : i32
    %107 = vector.broadcast %106 : i32 to vector<2x256xi32>
    %108 = arith.remsi %104, %107 : vector<2x256xi32>
    %c0_i32_60 = arith.constant 0 : i32
    %109 = vector.broadcast %c0_i32_60 : i32 to vector<2x256xi32>
    %110 = arith.cmpi ne, %108, %109 : vector<2x256xi32>
    %c0_i32_61 = arith.constant 0 : i32
    %111 = vector.broadcast %c0_i32_61 : i32 to vector<2x256xi32>
    %112 = arith.cmpi slt, %108, %111 : vector<2x256xi32>
    %c0_i32_62 = arith.constant 0 : i32
    %113 = arith.cmpi slt, %106, %c0_i32_62 : i32
    %114 = vector.broadcast %113 : i1 to vector<2x256xi1>
    %115 = vector.broadcast %114 : vector<2x256xi1> to vector<2x256xi1>
    %116 = arith.xori %112, %115 : vector<2x256xi1>
    %117 = arith.andi %116, %110 : vector<2x256xi1>
    %118 = vector.broadcast %106 : i32 to vector<2x256xi32>
    %119 = arith.addi %108, %118 : vector<2x256xi32>
    %120 = arith.select %117, %119, %108 : vector<2x256xi1>, vector<2x256xi32>
    %c1_i32_63 = arith.constant 1 : i32
    %121 = vector.broadcast %c1_i32_63 : i32 to vector<2x256xi32>
    %122 = arith.cmpi sge, %120, %121 : vector<2x256xi32>
    %c15_i32 = arith.constant 15 : i32
    %123 = vector.broadcast %c15_i32 : i32 to vector<2x256xi32>
    %124 = arith.cmpi slt, %120, %123 : vector<2x256xi32>
    %c16_i32_64 = arith.constant 16 : i32
    %125 = vector.broadcast %c16_i32_64 : i32 to vector<2x256xi32>
    %126 = arith.cmpi sge, %104, %125 : vector<2x256xi32>
    %c240_i32 = arith.constant 240 : i32
    %127 = vector.broadcast %c240_i32 : i32 to vector<2x256xi32>
    %128 = arith.cmpi slt, %104, %127 : vector<2x256xi32>
    %c1_i32_65 = arith.constant 1 : i32
    %129 = tpu.dynamic_rotate %103 by %c1_i32_65 dim 1 : vector<2x256xf32>, i32 -> vector<2x256xf32>
    %cst_66 = arith.constant 0.000000e+00 : f32
    %130 = vector.broadcast %cst_66 : f32 to vector<2x256xf32>
    %131 = arith.select %122, %129, %130 : vector<2x256xi1>, vector<2x256xf32>
    %c255_i32 = arith.constant 255 : i32
    %132 = tpu.dynamic_rotate %103 by %c255_i32 dim 1 : vector<2x256xf32>, i32 -> vector<2x256xf32>
    %cst_67 = arith.constant 0.000000e+00 : f32
    %133 = vector.broadcast %cst_67 : f32 to vector<2x256xf32>
    %134 = arith.select %124, %132, %133 : vector<2x256xi1>, vector<2x256xf32>
    %c0_68 = arith.constant 0 : index
    %135 = memref.load %arg6[%c0_68] : memref<9xf32, #tpu.memory_space<smem>>
    %136 = vector.broadcast %135 : f32 to vector<2x256xf32>
    %137 = arith.mulf %136, %131 : vector<2x256xf32>
    %c1_69 = arith.constant 1 : index
    %138 = memref.load %arg6[%c1_69] : memref<9xf32, #tpu.memory_space<smem>>
    %139 = vector.broadcast %138 : f32 to vector<2x256xf32>
    %140 = arith.mulf %139, %103 : vector<2x256xf32>
    %141 = arith.addf %137, %140 : vector<2x256xf32>
    %c2 = arith.constant 2 : index
    %142 = memref.load %arg6[%c2] : memref<9xf32, #tpu.memory_space<smem>>
    %143 = vector.broadcast %142 : f32 to vector<2x256xf32>
    %144 = arith.mulf %143, %134 : vector<2x256xf32>
    %145 = arith.addf %141, %144 : vector<2x256xf32>
    %c3 = arith.constant 3 : index
    %146 = memref.load %arg6[%c3] : memref<9xf32, #tpu.memory_space<smem>>
    %147 = vector.broadcast %146 : f32 to vector<2x256xf32>
    %148 = arith.mulf %147, %131 : vector<2x256xf32>
    %c4 = arith.constant 4 : index
    %149 = memref.load %arg6[%c4] : memref<9xf32, #tpu.memory_space<smem>>
    %150 = vector.broadcast %149 : f32 to vector<2x256xf32>
    %151 = arith.mulf %150, %103 : vector<2x256xf32>
    %152 = arith.addf %148, %151 : vector<2x256xf32>
    %c5 = arith.constant 5 : index
    %153 = memref.load %arg6[%c5] : memref<9xf32, #tpu.memory_space<smem>>
    %154 = vector.broadcast %153 : f32 to vector<2x256xf32>
    %155 = arith.mulf %154, %134 : vector<2x256xf32>
    %156 = arith.addf %152, %155 : vector<2x256xf32>
    %c6 = arith.constant 6 : index
    %157 = memref.load %arg6[%c6] : memref<9xf32, #tpu.memory_space<smem>>
    %158 = vector.broadcast %157 : f32 to vector<2x256xf32>
    %159 = arith.mulf %158, %131 : vector<2x256xf32>
    %c7 = arith.constant 7 : index
    %160 = memref.load %arg6[%c7] : memref<9xf32, #tpu.memory_space<smem>>
    %161 = vector.broadcast %160 : f32 to vector<2x256xf32>
    %162 = arith.mulf %161, %103 : vector<2x256xf32>
    %163 = arith.addf %159, %162 : vector<2x256xf32>
    %c8 = arith.constant 8 : index
    %164 = memref.load %arg6[%c8] : memref<9xf32, #tpu.memory_space<smem>>
    %165 = vector.broadcast %164 : f32 to vector<2x256xf32>
    %166 = arith.mulf %165, %134 : vector<2x256xf32>
    %167 = arith.addf %163, %166 : vector<2x256xf32>
    %c16_i32_70 = arith.constant 16 : i32
    %168 = tpu.dynamic_rotate %145 by %c16_i32_70 dim 1 : vector<2x256xf32>, i32 -> vector<2x256xf32>
    %cst_71 = arith.constant 0.000000e+00 : f32
    %169 = vector.broadcast %cst_71 : f32 to vector<2x256xf32>
    %170 = arith.select %126, %168, %169 : vector<2x256xi1>, vector<2x256xf32>
    %171 = arith.addf %170, %156 : vector<2x256xf32>
    %c240_i32_72 = arith.constant 240 : i32
    %172 = tpu.dynamic_rotate %167 by %c240_i32_72 dim 1 : vector<2x256xf32>, i32 -> vector<2x256xf32>
    %cst_73 = arith.constant 0.000000e+00 : f32
    %173 = vector.broadcast %cst_73 : f32 to vector<2x256xf32>
    %174 = arith.select %128, %172, %173 : vector<2x256xi1>, vector<2x256xf32>
    %175 = arith.addf %171, %174 : vector<2x256xf32>
    %176 = vector.shape_cast %175 : vector<2x256xf32> to vector<1x2x256xf32>
    %cst_74 = arith.constant dense<0.000000e+00> : vector<1xf32>
    %177 = vector.multi_reduction <add>, %176, %cst_74 [1, 2] : vector<1x2x256xf32> to vector<1xf32>
    %178 = vector.shape_cast %177 : vector<1xf32> to vector<1x1x1xf32>
    %179 = vector.extract %178[0, 0, 0] : f32 from vector<1x1x1xf32>
    %cst_75 = arith.constant 5.120000e+02 : f32
    %180 = arith.divf %179, %cst_75 : f32
    %181 = vector.broadcast %180 : f32 to vector<2x256xf32>
    %182 = arith.subf %175, %181 : vector<2x256xf32>
    %183 = arith.mulf %182, %182 : vector<2x256xf32>
    %184 = vector.shape_cast %183 : vector<2x256xf32> to vector<1x2x256xf32>
    %cst_76 = arith.constant dense<0.000000e+00> : vector<1xf32>
    %185 = vector.multi_reduction <add>, %184, %cst_76 [1, 2] : vector<1x2x256xf32> to vector<1xf32>
    %186 = vector.shape_cast %185 : vector<1xf32> to vector<1x1x1xf32>
    %187 = vector.extract %186[0, 0, 0] : f32 from vector<1x1x1xf32>
    %cst_77 = arith.constant 5.120000e+02 : f32
    %188 = arith.divf %187, %cst_77 : f32
    %cst_78 = arith.constant 9.99999974E-6 : f32
    %189 = arith.addf %188, %cst_78 : f32
    %190 = math.rsqrt %189 : f32
    %c0_79 = arith.constant 0 : index
    %191 = memref.load %arg7[%c0_79] : memref<3xf32, #tpu.memory_space<smem>>
    %c1_80 = arith.constant 1 : index
    %192 = memref.load %arg7[%c1_80] : memref<3xf32, #tpu.memory_space<smem>>
    %c2_81 = arith.constant 2 : index
    %193 = memref.load %arg7[%c2_81] : memref<3xf32, #tpu.memory_space<smem>>
    %194 = arith.mulf %190, %192 : f32
    %195 = vector.broadcast %194 : f32 to vector<2x256xf32>
    %196 = arith.mulf %182, %195 : vector<2x256xf32>
    %197 = vector.broadcast %193 : f32 to vector<2x256xf32>
    %198 = arith.addf %196, %197 : vector<2x256xf32>
    %199 = arith.negf %198 : vector<2x256xf32>
    %200 = math.exp %199 : vector<2x256xf32>
    %cst_82 = arith.constant 1.000000e+00 : f32
    %201 = vector.broadcast %cst_82 : f32 to vector<2x256xf32>
    %202 = arith.addf %201, %200 : vector<2x256xf32>
    %203 = arith.divf %201, %202 : vector<2x256xf32>
    %204 = arith.mulf %103, %203 : vector<2x256xf32>
    %205 = vector.broadcast %191 : f32 to vector<2x256xf32>
    %206 = arith.mulf %205, %204 : vector<2x256xf32>
    %c0_83 = arith.constant 0 : index
    %c0_84 = arith.constant 0 : index
    %207 = vector.load %arg0[%c0_83, %c0_84] : memref<64x256xf32, #tpu.memory_space<vmem>>, vector<32x256xf32>
    %208 = tpu.iota {dimensions = array<i32: 0>} : vector<2x256xi32>
    %c0_i32_85 = arith.constant 0 : i32
    %209 = vector.broadcast %c0_i32_85 : i32 to vector<2x256xi32>
    %210 = arith.cmpi eq, %208, %209 : vector<2x256xi32>
    %cst_86 = arith.constant 0.000000e+00 : f32
    %211 = vector.broadcast %cst_86 : f32 to vector<2x256xf32>
    %212 = arith.select %210, %206, %211 : vector<2x256xi1>, vector<2x256xf32>
    %cst_87 = arith.constant dense<0.000000e+00> : vector<256xf32>
    %213 = vector.multi_reduction <add>, %212, %cst_87 [0] : vector<2x256xf32> to vector<256xf32>
    %214 = vector.shape_cast %213 : vector<256xf32> to vector<1x256xf32>
    %215 = vector.broadcast %214 : vector<1x256xf32> to vector<32x256xf32>
    %216 = arith.addf %207, %215 : vector<32x256xf32>
    %c0_88 = arith.constant 0 : index
    %c0_89 = arith.constant 0 : index
    %217 = vector.load %arg8[%c0_88, %c0_89] : memref<64x256xf32, #tpu.memory_space<vmem>>, vector<32x256xf32>
    tpu.vector_store %arg8[%c0_88, %c0_89], %216 {strides = array<i32>} : memref<64x256xf32, #tpu.memory_space<vmem>>, vector<32x256xf32>,
    %c32_90 = arith.constant 32 : index
    %c0_91 = arith.constant 0 : index
    %218 = vector.load %arg0[%c32_90, %c0_91] : memref<64x256xf32, #tpu.memory_space<vmem>>, vector<32x256xf32>
    %219 = tpu.iota {dimensions = array<i32: 0>} : vector<2x256xi32>
    %c1_i32_92 = arith.constant 1 : i32
    %220 = vector.broadcast %c1_i32_92 : i32 to vector<2x256xi32>
    %221 = arith.cmpi eq, %219, %220 : vector<2x256xi32>
    %cst_93 = arith.constant 0.000000e+00 : f32
    %222 = vector.broadcast %cst_93 : f32 to vector<2x256xf32>
    %223 = arith.select %221, %206, %222 : vector<2x256xi1>, vector<2x256xf32>
    %cst_94 = arith.constant dense<0.000000e+00> : vector<256xf32>
    %224 = vector.multi_reduction <add>, %223, %cst_94 [0] : vector<2x256xf32> to vector<256xf32>
    %225 = vector.shape_cast %224 : vector<256xf32> to vector<1x256xf32>
    %226 = vector.broadcast %225 : vector<1x256xf32> to vector<32x256xf32>
    %227 = arith.addf %218, %226 : vector<32x256xf32>
    %c32_95 = arith.constant 32 : index
    %c0_96 = arith.constant 0 : index
    %228 = vector.load %arg8[%c32_95, %c0_96] : memref<64x256xf32, #tpu.memory_space<vmem>>, vector<32x256xf32>
    tpu.vector_store %arg8[%c32_95, %c0_96], %227 {strides = array<i32>} : memref<64x256xf32, #tpu.memory_space<vmem>>, vector<32x256xf32>,
    %cst_97 = arith.constant dense<0x7F800000> : vector<2xf32>
    %229 = vector.multi_reduction <minimumf>, %206, %cst_97 [1] : vector<2x256xf32> to vector<2xf32>
    %230 = vector.shape_cast %229 : vector<2xf32> to vector<2x1xf32>
    %cst_98 = arith.constant dense<0xFF800000> : vector<2xf32>
    %231 = vector.multi_reduction <maximumf>, %206, %cst_98 [1] : vector<2x256xf32> to vector<2xf32>
    %232 = vector.shape_cast %231 : vector<2xf32> to vector<2x1xf32>
    %233 = arith.subf %232, %230 : vector<2x1xf32>
    %cst_99 = arith.constant 0.000000e+00 : f32
    %234 = vector.broadcast %cst_99 : f32 to vector<2x1xf32>
    %235 = arith.cmpf oeq, %233, %234 : vector<2x1xf32>
    %cst_100 = arith.constant 9.99999974E-6 : f32
    %236 = vector.broadcast %cst_100 : f32 to vector<2x1xf32>
    %237 = arith.select %235, %236, %233 : vector<2x1xi1>, vector<2x1xf32>
    %238 = vector.broadcast %230 : vector<2x1xf32> to vector<2x256xf32>
    %239 = arith.subf %206, %238 : vector<2x256xf32>
    %240 = vector.broadcast %237 : vector<2x1xf32> to vector<2x256xf32>
    %241 = arith.divf %239, %240 : vector<2x256xf32>
    %c0_101 = arith.constant 0 : index
    %c0_102 = arith.constant 0 : index
    %242 = vector.load %arg9[%c0_101, %c0_102] : memref<2x256xf32, #tpu.memory_space<vmem>>, vector<2x256xf32>
    tpu.vector_store %arg9[%c0_101, %c0_102], %241 {strides = array<i32>} : memref<2x256xf32, #tpu.memory_space<vmem>>, vector<2x256xf32>,
    return
  }
}

</mosaic_0001>

<llo_original>
// kernel: tpu_custom_call.1
$region0: #{tpu_custom_call.1}
  #allocation0 [shape = 'u32[]', space=smem, size = 0x4, offset = 0x4, fixed_abs, tag = 'smem constant byte address 0x4 - core index']
  #allocation1 [shape = 'u32[144,128]{1,0:T(1,128)}', space=vmem, size = 0x12000, scoped, tag = 'internal scratch']
  #allocation2 [shape = 'f32[2,256]{1,0:T(2,128)}', space=vmem, size = 0x800, scoped, tag = 'scratch operand']
  #allocation3 [shape = 'f32[2,256]{1,0:T(2,128)}', space=vmem, size = 0x800, scoped, tag = 'scratch operand']
  %s0 = inlined_call_operand.hbm [shape: f32[64,256], index: 0, kind: input, shape index: {}]
  %s1 = inlined_call_operand.vmem [shape: f32[32,1], index: 1, kind: input, shape index: {}]
  %s2 = inlined_call_operand.vmem [shape: f32[4,32], index: 2, kind: input, shape index: {}]
  %s3 = inlined_call_operand.vmem [shape: f32[32,4], index: 3, kind: input, shape index: {}]
  %s4 = inlined_call_operand.vmem [shape: f32[32,32], index: 4, kind: input, shape index: {}]
  %s5 = inlined_call_operand.vmem [shape: f32[32,1], index: 5, kind: input, shape index: {}]
  %s6 = inlined_call_operand.vmem [shape: f32[9], index: 6, kind: input, shape index: {}]
  %s7 = inlined_call_operand.vmem [shape: f32[3], index: 7, kind: input, shape index: {}]
  %s8 = inlined_call_operand.hbm [shape: f32[64,256], index: 8, kind: output, shape index: {0}]
  %s9 = inlined_call_operand.hbm [shape: f32[2,256], index: 9, kind: output, shape index: {1}]
  %10 = xla_tuple %s8, %s9
  %s11 = sld [smem:[#allocation0]]
  $region62: #{tpu_custom_call.1} parent=0
    _
  %s13 = ssub.s32 1, %s11
  %s14 = scalar_select 0, %s13, %s11
  $region1: #{tpu_custom_call.1} parent=0
    #allocation4 [shape = 'u8[65536]{0}', space=vmem, size = 0x10000, scoped, tag = 'input window, operand 0, single buffered']
    #allocation5 [shape = 's32[1]{0}', space=sflag, size = 0x4, scoped, tag = 'scoped memory for tpu_custom_call.1']
    #allocation6 [shape = 's32[1]{0}', space=sflag, size = 0x4, scoped, tag = 'scoped memory for tpu_custom_call.1']
    #allocation7 [shape = 's32[1]{0}', space=sflag, size = 0x4, scoped, tag = 'scoped memory for tpu_custom_call.1']
    #allocation8 [shape = 'u8[512]{0}', space=smem, size = 0x200, scoped, tag = 'input window, operand 6, single buffered']
    #allocation9 [shape = 'u8[512]{0}', space=smem, size = 0x200, scoped, tag = 'input window, operand 7, single buffered']
    #allocation10 [shape = 's32[1]{0}', space=sflag, size = 0x4, scoped, tag = 'scoped memory for tpu_custom_call.1']
    #allocation11 [shape = 'u8[65536]{0}', space=vmem, size = 0x10000, scoped, tag = 'output window, operand 0, single buffered']
    #allocation12 [shape = 'u8[2048]{0}', space=vmem, size = 0x800, scoped, tag = 'output window, operand 1, single buffered']
    #allocation13 [shape = 's32[1]{0}', space=sflag, size = 0x4, scoped, tag = 'scoped memory for tpu_custom_call.1']
    %15 = vsyncpa [#allocation5], 0
    %16 = vsyncpa [#allocation7], 0
    %17 = vsyncpa [#allocation10], 0
    %18 = vsyncpa [#allocation6], 0
    %19 = vsyncpa [#allocation13], 0
    // Predicated region
    $region2: #{tpu_custom_call.1} parent=1 // pred_check
      _
    $region3: #{tpu_custom_call.1} parent=1 // pred_check_branch
      %21 = sbr.rel (0) target = $region5
    $region4: #{tpu_custom_call.1} parent=1 // pred_region
      %s23 = ssub.s32 2048, 2048
      %24 = vsyncadd [#allocation5], %s23
      %s25 = sshll.u32 [#allocation4], 4
      %s26 = int_to_ptr.vmem [resolvable:$true] %s25
      %31 = dma.hbm_to_vmem [thread:$0]  %s0, 2048, %s26, [#allocation5], 256, 256, 16
    $region5: #{tpu_custom_call.1} parent=1 // pred_fallthru
      _
    // Predicated region
    $region6: #{tpu_custom_call.1} parent=1 // pred_check
      _
    $region7: #{tpu_custom_call.1} parent=1 // pred_check_branch
      %33 = sbr.rel (0) target = $region9
    $region8: #{tpu_custom_call.1} parent=1 // pred_region
      _
    $region9: #{tpu_custom_call.1} parent=1 // pred_fallthru
      _
    // Predicated region
    $region10: #{tpu_custom_call.1} parent=1 // pred_check
      _
    $region11: #{tpu_custom_call.1} parent=1 // pred_check_branch
      %35 = sbr.rel (0) target = $region13
    $region12: #{tpu_custom_call.1} parent=1 // pred_region
      _
    $region13: #{tpu_custom_call.1} parent=1 // pred_fallthru
      _
    // Predicated region
    $region14: #{tpu_custom_call.1} parent=1 // pred_check
      _
    $region15: #{tpu_custom_call.1} parent=1 // pred_check_branch
      %37 = sbr.rel (0) target = $region17
    $region16: #{tpu_custom_call.1} parent=1 // pred_region
      _
    $region17: #{tpu_custom_call.1} parent=1 // pred_fallthru
      _
    // Predicated region
    $region18: #{tpu_custom_call.1} parent=1 // pred_check
      _
    $region19: #{tpu_custom_call.1} parent=1 // pred_check_branch
      %39 = sbr.rel (0) target = $region21
    $region20: #{tpu_custom_call.1} parent=1 // pred_region
      _
    $region21: #{tpu_custom_call.1} parent=1 // pred_fallthru
      _
    // Predicated region
    $region22: #{tpu_custom_call.1} parent=1 // pred_check
      _
    $region23: #{tpu_custom_call.1} parent=1 // pred_check_branch
      %41 = sbr.rel (0) target = $region25
    $region24: #{tpu_custom_call.1} parent=1 // pred_region
      _
    $region25: #{tpu_custom_call.1} parent=1 // pred_fallthru
      _
    // Predicated region
    $region26: #{tpu_custom_call.1} parent=1 // pred_check
      _
    $region27: #{tpu_custom_call.1} parent=1 // pred_check_branch
      %43 = sbr.rel (0) target = $region29
    $region28: #{tpu_custom_call.1} parent=1 // pred_region
      %s45 = ssub.s32 16, 16
      %46 = vsyncadd [#allocation7], %s45
      %s48 = sshll.u32 %s6, 4
      %s49 = int_to_ptr.vmem [resolvable:$true] %s48
      %51 = dma.vmem_to_smem %s49, 16, [#allocation8], [#allocation7]
    $region29: #{tpu_custom_call.1} parent=1 // pred_fallthru
      _
    // Predicated region
    $region30: #{tpu_custom_call.1} parent=1 // pred_check
      _
    $region31: #{tpu_custom_call.1} parent=1 // pred_check_branch
      %53 = sbr.rel (0) target = $region33
    $region32: #{tpu_custom_call.1} parent=1 // pred_region
      %s55 = ssub.s32 16, 16
      %56 = vsyncadd [#allocation10], %s55
      %s58 = sshll.u32 %s7, 4
      %s59 = int_to_ptr.vmem [resolvable:$true] %s58
      %61 = dma.vmem_to_smem %s59, 16, [#allocation9], [#allocation10]
    $region33: #{tpu_custom_call.1} parent=1 // pred_fallthru
      _
    // Predicated region
    $region34: #{tpu_custom_call.1} parent=1 // pred_check
      _
    $region35: #{tpu_custom_call.1} parent=1 // pred_check_branch
      %63 = sbr.rel (0) target = $region37
    $region36: #{tpu_custom_call.1} parent=1 // pred_region
      %64 = dma.done [#allocation5], 2048
    $region37: #{tpu_custom_call.1} parent=1 // pred_fallthru
      _
    // Predicated region
    $region38: #{tpu_custom_call.1} parent=1 // pred_check
      _
    $region39: #{tpu_custom_call.1} parent=1 // pred_check_branch
      %66 = sbr.rel (0) target = $region41
    $region40: #{tpu_custom_call.1} parent=1 // pred_region
      %67 = dma.done [#allocation7], 16
    $region41: #{tpu_custom_call.1} parent=1 // pred_fallthru
      _
    // Predicated region
    $region42: #{tpu_custom_call.1} parent=1 // pred_check
      _
    $region43: #{tpu_custom_call.1} parent=1 // pred_check_branch
      %69 = sbr.rel (0) target = $region45
    $region44: #{tpu_custom_call.1} parent=1 // pred_region
      %70 = dma.done [#allocation10], 16
    $region45: #{tpu_custom_call.1} parent=1 // pred_fallthru
      _
    %71 = sfence
    %v72 = vld [vmem:[%s1] sm:$0xff]
    %v73 = vld [vmem:[%s1 + $0x8] sm:$0xff]
    %v74 = vld [vmem:[%s1 + $0x10] sm:$0xff]
    %v75 = vld [vmem:[%s1 + $0x18] sm:$0xff]
    %v76 = vld [vmem:[#allocation4] sm:$0xff]
    %v77 = vld [vmem:[#allocation4 + $0x8] sm:$0xff]
    %v78 = vld [vmem:[#allocation4 + $0x10] sm:$0xff]
    %v79 = vld [vmem:[#allocation4 + $0x18] sm:$0xff]
    %v80 = vld [vmem:[#allocation4 + $0x20] sm:$0xff]
    %v81 = vld [vmem:[#allocation4 + $0x28] sm:$0xff]
    %v82 = vld [vmem:[#allocation4 + $0x30] sm:$0xff]
    %v83 = vld [vmem:[#allocation4 + $0x38] sm:$0xff]
    %85 = vset.pattern.permute.xlu0 0
    %86 = vperm.xlu0 %85, %v72
    %v87 = vpop.permute.xlu0 %86
    %90 = vset.pattern.permute.xlu0 0
    %91 = vperm.xlu0 %90, %v73
    %v92 = vpop.permute.xlu0 %91
    %95 = vset.pattern.permute.xlu0 0
    %96 = vperm.xlu0 %95, %v74
    %v97 = vpop.permute.xlu0 %96
    %100 = vset.pattern.permute.xlu0 0
    %101 = vperm.xlu0 %100, %v75
    %v102 = vpop.permute.xlu0 %101
    %v104 = vmul.f32 %v87, %v76
    %v105 = vmul.f32 %v87, %v77
    %v106 = vmul.f32 %v92, %v78
    %v107 = vmul.f32 %v92, %v79
    %v108 = vmul.f32 %v97, %v80
    %v109 = vmul.f32 %v97, %v81
    %v110 = vmul.f32 %v102, %v82
    %v111 = vmul.f32 %v102, %v83
    %v112 = vadd.f32 %v104, %v106
    %v113 = vadd.f32 %v112, %v108
    %v114 = vadd.f32 %v113, %v110
    %v115 = vrot.slane %v114, 4
    %v116 = vadd.f32 %v114, %v115
    %v117 = vrot.slane %v116, 2
    %v118 = vadd.f32 %v116, %v117
    %v119 = vrot.slane %v118, 1
    %v120 = vadd.f32 %v118, %v119
    %v121 = vadd.f32 %v105, %v107
    %v122 = vadd.f32 %v121, %v109
    %v123 = vadd.f32 %v122, %v111
    %v124 = vrot.slane %v123, 4
    %v125 = vadd.f32 %v123, %v124
    %v126 = vrot.slane %v125, 2
    %v127 = vadd.f32 %v125, %v126
    %v128 = vrot.slane %v127, 1
    %v129 = vadd.f32 %v127, %v128
    %v132 = vcombine.low %v120, %v129
    %v134 = vunpack.c.l.s4 1966171168
    %v135 = vunpack.c.0.s8 %v134
    %v136 = vlaneseq
    %v137 = vshrl.u32 %v136, 7
    %v138 = vsub.s32 %v135, %v137
    %v139 = vrot.slane %v132, %v138
    %v141 = vunpack.c.l.s4 1966171168
    %v142 = vunpack.c.0.s8 %v141
    %v143 = vlaneseq
    %v144 = vshrl.u32 %v143, 7
    %v145 = vsub.s32 %v142, %v144
    %v146 = vrot.slane %v139, %v145
    %v148 = vlaneseq
    %vm149 = vcmp.ge.s32.totalorder %v148, 0
    %vm150 = vcmp.lt.s32.totalorder %v148, 256
    %vm151 = vmand %vm149, %vm150
    %152 = vst.msk [vmem:[#allocation2] ss:$2 sm:$0x3] %vm151, %v146
    %v153 = vld [vmem:[#allocation4 + $0x40] sm:$0xff]
    %v154 = vld [vmem:[#allocation4 + $0x48] sm:$0xff]
    %v155 = vld [vmem:[#allocation4 + $0x50] sm:$0xff]
    %v156 = vld [vmem:[#allocation4 + $0x58] sm:$0xff]
    %v157 = vld [vmem:[#allocation4 + $0x60] sm:$0xff]
    %v158 = vld [vmem:[#allocation4 + $0x68] sm:$0xff]
    %v159 = vld [vmem:[#allocation4 + $0x70] sm:$0xff]
    %v160 = vld [vmem:[#allocation4 + $0x78] sm:$0xff]
    %v161 = vmul.f32 %v87, %v153
    %v162 = vmul.f32 %v87, %v154
    %v163 = vmul.f32 %v92, %v155
    %v164 = vmul.f32 %v92, %v156
    %v165 = vmul.f32 %v97, %v157
    %v166 = vmul.f32 %v97, %v158
    %v167 = vmul.f32 %v102, %v159
    %v168 = vmul.f32 %v102, %v160
    %v169 = vadd.f32 %v161, %v163
    %v170 = vadd.f32 %v169, %v165
    %v171 = vadd.f32 %v170, %v167
    %v172 = vrot.slane %v171, 4
    %v173 = vadd.f32 %v171, %v172
    %v174 = vrot.slane %v173, 2
    %v175 = vadd.f32 %v173, %v174
    %v176 = vrot.slane %v175, 1
    %v177 = vadd.f32 %v175, %v176
    %v178 = vadd.f32 %v162, %v164
    %v179 = vadd.f32 %v178, %v166
    %v180 = vadd.f32 %v179, %v168
    %v181 = vrot.slane %v180, 4
    %v182 = vadd.f32 %v180, %v181
    %v183 = vrot.slane %v182, 2
    %v184 = vadd.f32 %v182, %v183
    %v185 = vrot.slane %v184, 1
    %v186 = vadd.f32 %v184, %v185
    %v189 = vcombine.low %v177, %v186
    %v191 = vunpack.c.l.s4 1966171168
    %v192 = vunpack.c.0.s8 %v191
    %v193 = vlaneseq
    %v194 = vshrl.u32 %v193, 7
    %v195 = vsub.s32 %v192, %v194
    %v196 = vrot.slane %v189, %v195
    %v198 = vunpack.c.l.s4 1966171168
    %v199 = vunpack.c.0.s8 %v198
    %v200 = vlaneseq
    %v201 = vshrl.u32 %v200, 7
    %v202 = vsub.s32 %v199, %v201
    %v203 = vrot.slane %v196, %v202
    %s205 = scalar_lea.vmem [#allocation2], 1
    %206 = vst.msk [vmem:[%s205] ss:$2 sm:$0x3] %vm151, %v203
    %v207 = vld [vmem:[#allocation2] sm:$0xf]
    %v210 = vunpack.c.l.s4 1983009808
    %v211 = vunpack.c.0.s8 %v210
    %v212 = vlaneseq
    %v213 = vshrl.u32 %v212, 7
    %v214 = vsub.s32 %v211, %v213
    %v215 = vrot.slane %v207, %v214
    %v216 = vcombine.high %v215, %v215
    %vm219 = vcmask 1041408
    %v220 = vsel %vm219, %v215, -inf
    %v221 = vsel %vm219, %v216, -inf
    %v222 = vmax.f32 %v220, %v221
    %223 = vmax.xlane.f32.xlu0 %v222
    %v224 = vpop.xlane.xlu0 %223
    %v227 = vunpack.c.l.s4 269488144
    %v228 = vunpack.c.0.s8 %v227
    %v229 = vlaneseq
    %v230 = vshrl.u32 %v229, 7
    %v231 = vsub.s32 %v228, %v230
    %v232 = vrot.slane %v224, %v231
    %v234 = vsub.f32 %v207, %v232
    %v235 = vmul.f32 %v234, 1.442695
    %v236 = vpow.pop %v235
    %v239 = vunpack.c.l.s4 1983009808
    %v240 = vunpack.c.0.s8 %v239
    %v241 = vlaneseq
    %v242 = vshrl.u32 %v241, 7
    %v243 = vsub.s32 %v240, %v242
    %v244 = vrot.slane %v236, %v243
    %v245 = vcombine.high %v244, %v244
    %v248 = vsel %vm219, %v244, 0.0
    %v249 = vsel %vm219, %v245, 0.0
    %v250 = vadd.f32 %v248, %v249
    %251 = vadd.xlane.f32.xlu0 %v250
    %v252 = vpop.xlane.xlu0 %251
    %v255 = vunpack.c.l.s4 269488144
    %v256 = vunpack.c.0.s8 %v255
    %v257 = vlaneseq
    %v258 = vshrl.u32 %v257, 7
    %v259 = vsub.s32 %v256, %v258
    %v260 = vrot.slane %v252, %v259
    %v262 = vrcp.pop %v260
    %v263 = vmul.f32 %v236, %v262
    %v264 = vlaneseq
    %v265 = vand.u32 %v264, 127
    %v266 = vld [vmem:[#allocation4] sm:$0xff]
    %v267 = vld [vmem:[#allocation4 + $0x8] sm:$0xff]
    %v268 = vld [vmem:[#allocation4 + $0x10] sm:$0xff]
    %v269 = vld [vmem:[#allocation4 + $0x18] sm:$0xff]
    %v270 = vld [vmem:[#allocation4 + $0x20] sm:$0xff]
    %v271 = vld [vmem:[#allocation4 + $0x28] sm:$0xff]
    %v272 = vld [vmem:[#allocation4 + $0x30] sm:$0xff]
    %v273 = vld [vmem:[#allocation4 + $0x38] sm:$0xff]
    %v274 = vlaneseq
    %v275 = vshrl.u32 %v274, 7
    %vm276 = vcmp.eq.s32.totalorder %v275, 0
    %v279 = vunpack.c.l.s4 1983009808
    %v280 = vunpack.c.0.s8 %v279
    %v281 = vlaneseq
    %v282 = vshrl.u32 %v281, 7
    %v283 = vsub.s32 %v280, %v282
    %v284 = vrot.slane %v263, %v283
    %v285 = vcombine.high %v284, %v284
    %v288 = vsel %vm276, %v284, 0.0
    %v289 = vsel %vm276, %v285, 0.0
    %v290 = vsel %vm219, %v288, 0.0
    %v291 = vrot.slane %v290, 4
    %v292 = vadd.f32 %v290, %v291
    %v293 = vrot.slane %v292, 2
    %v294 = vadd.f32 %v292, %v293
    %v295 = vrot.slane %v294, 1
    %v296 = vadd.f32 %v294, %v295
    %v297 = vsel %vm219, %v289, 0.0
    %v298 = vrot.slane %v297, 4
    %v299 = vadd.f32 %v297, %v298
    %v300 = vrot.slane %v299, 2
    %v301 = vadd.f32 %v299, %v300
    %v302 = vrot.slane %v301, 1
    %v303 = vadd.f32 %v301, %v302
    %v304 = vmul.f32 %v266, %v296
    %v305 = vmul.f32 %v267, %v303
    %v306 = vmul.f32 %v268, %v296
    %v307 = vmul.f32 %v269, %v303
    %v308 = vmul.f32 %v270, %v296
    %v309 = vmul.f32 %v271, %v303
    %v310 = vmul.f32 %v272, %v296
    %v311 = vmul.f32 %v273, %v303
    %v312 = vadd.f32 %v304, %v305
    %313 = vadd.xlane.f32.xlu0 %v312
    %v314 = vpop.xlane.xlu0 %313
    %v315 = vadd.f32 %v306, %v307
    %316 = vadd.xlane.f32.xlu0 %v315
    %v317 = vpop.xlane.xlu0 %316
    %v318 = vadd.f32 %v308, %v309
    %319 = vadd.xlane.f32.xlu0 %v318
    %v320 = vpop.xlane.xlu0 %319
    %v321 = vadd.f32 %v310, %v311
    %322 = vadd.xlane.f32.xlu0 %v321
    %v323 = vpop.xlane.xlu0 %322
    %vm324 = vcmp.eq.s32.totalorder %v265, 0
    %v325 = vsel %vm324, %v314, 0.0
    %v326 = vsel %vm324, %v317, 0.0
    %v327 = vsel %vm324, %v320, 0.0
    %v328 = vsel %vm324, %v323, 0.0
    %v329 = vadd.f32 %v325, 0.0
    %v330 = vadd.f32 %v326, 0.0
    %v331 = vadd.f32 %v327, 0.0
    %v332 = vadd.f32 %v328, 0.0
    %v333 = vld [vmem:[#allocation4 + $0x40] sm:$0xff]
    %v334 = vld [vmem:[#allocation4 + $0x48] sm:$0xff]
    %v335 = vld [vmem:[#allocation4 + $0x50] sm:$0xff]
    %v336 = vld [vmem:[#allocation4 + $0x58] sm:$0xff]
    %v337 = vld [vmem:[#allocation4 + $0x60] sm:$0xff]
    %v338 = vld [vmem:[#allocation4 + $0x68] sm:$0xff]
    %v339 = vld [vmem:[#allocation4 + $0x70] sm:$0xff]
    %v340 = vld [vmem:[#allocation4 + $0x78] sm:$0xff]
    %vm341 = vcmp.eq.s32.totalorder %v275, 1
    %v342 = vsel %vm341, %v284, 0.0
    %v343 = vsel %vm341, %v285, 0.0
    %v344 = vsel %vm219, %v342, 0.0
    %v345 = vrot.slane %v344, 4
    %v346 = vadd.f32 %v344, %v345
    %v347 = vrot.slane %v346, 2
    %v348 = vadd.f32 %v346, %v347
    %v349 = vrot.slane %v348, 1
    %v350 = vadd.f32 %v348, %v349
    %v351 = vsel %vm219, %v343, 0.0
    %v352 = vrot.slane %v351, 4
    %v353 = vadd.f32 %v351, %v352
    %v354 = vrot.slane %v353, 2
    %v355 = vadd.f32 %v353, %v354
    %v356 = vrot.slane %v355, 1
    %v357 = vadd.f32 %v355, %v356
    %v358 = vmul.f32 %v333, %v350
    %v359 = vmul.f32 %v334, %v357
    %v360 = vmul.f32 %v335, %v350
    %v361 = vmul.f32 %v336, %v357
    %v362 = vmul.f32 %v337, %v350
    %v363 = vmul.f32 %v338, %v357
    %v364 = vmul.f32 %v339, %v350
    %v365 = vmul.f32 %v340, %v357
    %v366 = vadd.f32 %v358, %v359
    %367 = vadd.xlane.f32.xlu0 %v366
    %v368 = vpop.xlane.xlu0 %367
    %v369 = vadd.f32 %v360, %v361
    %370 = vadd.xlane.f32.xlu0 %v369
    %v371 = vpop.xlane.xlu0 %370
    %v372 = vadd.f32 %v362, %v363
    %373 = vadd.xlane.f32.xlu0 %v372
    %v374 = vpop.xlane.xlu0 %373
    %v375 = vadd.f32 %v364, %v365
    %376 = vadd.xlane.f32.xlu0 %v375
    %v377 = vpop.xlane.xlu0 %376
    %vm378 = vcmp.eq.s32.totalorder %v265, 1
    %v379 = vsel %vm378, %v368, 0.0
    %v380 = vsel %vm378, %v371, 0.0
    %v381 = vsel %vm378, %v374, 0.0
    %v382 = vsel %vm378, %v377, 0.0
    %v383 = vadd.f32 %v329, %v379
    %v384 = vadd.f32 %v330, %v380
    %v385 = vadd.f32 %v331, %v381
    %v386 = vadd.f32 %v332, %v382
    %v387 = vld [vmem:[%s2] sm:$0xf]
    %vm388 = vcmask 261120
    %v390 = vsel %vm388, %v387, 0
    %392 = vmatprep.subr.mxu0 0.0
    %393 = vmatpush1.msra.mxu0 %v383
    %394 = vmatprep.subr.mxu0 0.0
    %395 = vmatpush1.msra.mxu0 %v384
    %396 = vmatprep.subr.mxu0 0.0
    %397 = vmatpush1.msra.mxu0 %v385
    %398 = vmatprep.subr.mxu0 0.0
    %399 = vmatpush1.msra.mxu0 %v386
    %400 = vmatprep.subr.mxu0 0.0
    %401 = vmatpush1.msra.mxu0 0.0
    %402 = vmatprep.subr.mxu0 0.0
    %403 = vmatpush1.msra.mxu0 0.0
    %404 = vmatprep.subr.mxu0 0.0
    %405 = vmatpush1.msra.mxu0 0.0
    %406 = vmatprep.subr.mxu0 0.0
    %407 = vmatpush1.msra.mxu0 0.0
    %408 = vmatprep.subr.mxu0 0.0
    %409 = vmatpush1.msra.mxu0 0.0
    %410 = vmatprep.subr.mxu0 0.0
    %411 = vmatpush1.msra.mxu0 0.0
    %412 = vmatprep.subr.mxu0 0.0
    %413 = vmatpush1.msra.mxu0 0.0
    %414 = vmatprep.subr.mxu0 0.0
    %415 = vmatpush1.msra.mxu0 0.0
    %416 = vmatprep.subr.mxu0 0.0
    %417 = vmatpush1.msra.mxu0 0.0
    %418 = vmatprep.subr.mxu0 0.0
    %419 = vmatpush1.msra.mxu0 0.0
    %420 = vmatprep.subr.mxu0 0.0
    %421 = vmatpush1.msra.mxu0 0.0
    %422 = vmatprep.subr.mxu0 0.0
    %423 = vmatpush1.msra.mxu0 0.0
    %424 = vmatprep.subr.mxu0 0.0
    %425 = vmatpush1.msra.mxu0 0.0
    %426 = vmatprep.subr.mxu0 0.0
    %427 = vmatpush1.msra.mxu0 0.0
    %428 = vmatprep.subr.mxu0 0.0
    %429 = vmatpush1.msra.mxu0 0.0
    %430 = vmatprep.subr.mxu0 0.0
    %431 = vmatpush1.msra.mxu0 0.0
    %432 = vmatprep.subr.mxu0 0.0
    %433 = vmatpush1.msra.mxu0 0.0
    %434 = vmatprep.subr.mxu0 0.0
    %435 = vmatpush1.msra.mxu0 0.0
    %436 = vmatprep.subr.mxu0 0.0
    %437 = vmatpush1.msra.mxu0 0.0
    %438 = vmatprep.subr.mxu0 0.0
    %439 = vmatpush1.msra.mxu0 0.0
    %440 = vmatprep.subr.mxu0 0.0
    %441 = vmatpush1.msra.mxu0 0.0
    %442 = vmatprep.subr.mxu0 0.0
    %443 = vmatpush1.msra.mxu0 0.0
    %444 = vmatprep.subr.mxu0 0.0
    %445 = vmatpush1.msra.mxu0 0.0
    %446 = vmatprep.subr.mxu0 0.0
    %447 = vmatpush1.msra.mxu0 0.0
    %448 = vmatprep.subr.mxu0 0.0
    %449 = vmatpush1.msra.mxu0 0.0
    %450 = vmatprep.subr.mxu0 0.0
    %451 = vmatpush1.msra.mxu0 0.0
    %452 = vmatprep.subr.mxu0 0.0
    %453 = vmatpush1.msra.mxu0 0.0
    %454 = vmatprep.subr.mxu0 0.0
    %455 = vmatpush1.msra.mxu0 0.0
    %456 = vmatprep.mubr.f32.mxu0 0.0
    %457 = vmatmul.mubr.f32.gmra.mrb[0].mxu0 %v390
    %v458 = vpop.f32.mrb[0].mxu0
    %v459 = vadd.f32 0.0, %v458
    %v460 = vpop.f32.mrb[0].mxu0
    %461 = vdwg.mxu0
    %v462 = vmax.f32 %v459, 0.0
    %v463 = vld [vmem:[%s3] sm:$0xff]
    %v464 = vld [vmem:[%s3 + $0x8] sm:$0xff]
    %v465 = vld [vmem:[%s3 + $0x10] sm:$0xff]
    %v466 = vld [vmem:[%s3 + $0x18] sm:$0xff]
    %vm467 = vcmask 31744
    %v469 = vsel %vm467, %v463, 0
    %v472 = vsel %vm467, %v464, 0
    %v475 = vsel %vm467, %v465, 0
    %v478 = vsel %vm467, %v466, 0
    %vm480 = vcmask 1043456
    %v482 = vsel %vm480, %v462, 0
    %484 = vmatprep.subr.mxu0 0.0
    %485 = vmatpush1.msra.mxu0 %v482
    %486 = vmatprep.subr.mxu0 0.0
    %487 = vmatpush1.msra.mxu0 0.0
    %488 = vmatprep.subr.mxu0 0.0
    %489 = vmatpush1.msra.mxu0 0.0
    %490 = vmatprep.subr.mxu0 0.0
    %491 = vmatpush1.msra.mxu0 0.0
    %492 = vmatprep.subr.mxu0 0.0
    %493 = vmatpush1.msra.mxu0 0.0
    %494 = vmatprep.subr.mxu0 0.0
    %495 = vmatpush1.msra.mxu0 0.0
    %496 = vmatprep.subr.mxu0 0.0
    %497 = vmatpush1.msra.mxu0 0.0
    %498 = vmatprep.subr.mxu0 0.0
    %499 = vmatpush1.msra.mxu0 0.0
    %500 = vmatprep.subr.mxu0 0.0
    %501 = vmatpush1.msra.mxu0 0.0
    %502 = vmatprep.subr.mxu0 0.0
    %503 = vmatpush1.msra.mxu0 0.0
    %504 = vmatprep.subr.mxu0 0.0
    %505 = vmatpush1.msra.mxu0 0.0
    %506 = vmatprep.subr.mxu0 0.0
    %507 = vmatpush1.msra.mxu0 0.0
    %508 = vmatprep.subr.mxu0 0.0
    %509 = vmatpush1.msra.mxu0 0.0
    %510 = vmatprep.subr.mxu0 0.0
    %511 = vmatpush1.msra.mxu0 0.0
    %512 = vmatprep.subr.mxu0 0.0
    %513 = vmatpush1.msra.mxu0 0.0
    %514 = vmatprep.subr.mxu0 0.0
    %515 = vmatpush1.msra.mxu0 0.0
    %516 = vmatprep.subr.mxu0 0.0
    %517 = vmatpush1.msra.mxu0 0.0
    %518 = vmatprep.subr.mxu0 0.0
    %519 = vmatpush1.msra.mxu0 0.0
    %520 = vmatprep.subr.mxu0 0.0
    %521 = vmatpush1.msra.mxu0 0.0
    %522 = vmatprep.subr.mxu0 0.0
    %523 = vmatpush1.msra.mxu0 0.0
    %524 = vmatprep.subr.mxu0 0.0
    %525 = vmatpush1.msra.mxu0 0.0
    %526 = vmatprep.subr.mxu0 0.0
    %527 = vmatpush1.msra.mxu0 0.0
    %528 = vmatprep.subr.mxu0 0.0
    %529 = vmatpush1.msra.mxu0 0.0
    %530 = vmatprep.subr.mxu0 0.0
    %531 = vmatpush1.msra.mxu0 0.0
    %532 = vmatprep.subr.mxu0 0.0
    %533 = vmatpush1.msra.mxu0 0.0
    %534 = vmatprep.subr.mxu0 0.0
    %535 = vmatpush1.msra.mxu0 0.0
    %536 = vmatprep.subr.mxu0 0.0
    %537 = vmatpush1.msra.mxu0 0.0
    %538 = vmatprep.subr.mxu0 0.0
    %539 = vmatpush1.msra.mxu0 0.0
    %540 = vmatprep.subr.mxu0 0.0
    %541 = vmatpush1.msra.mxu0 0.0
    %542 = vmatprep.subr.mxu0 0.0
    %543 = vmatpush1.msra.mxu0 0.0
    %544 = vmatprep.subr.mxu0 0.0
    %545 = vmatpush1.msra.mxu0 0.0
    %546 = vmatprep.subr.mxu0 0.0
    %547 = vmatpush1.msra.mxu0 0.0
    %548 = vmatprep.mubr.f32.mxu0 0.0
    %549 = vmatmul.mubr.f32.gmra.mrb[0].mxu0 %v469
    %v550 = vpop.f32.mrb[0].mxu0
    %v551 = vadd.f32 0.0, %v550
    %v552 = vpop.f32.mrb[0].mxu0
    %553 = vmatprep.mubr.f32.mxu0 0.0
    %554 = vmatmul.mubr.f32.gmra.mrb[0].mxu0 %v472
    %v555 = vpop.f32.mrb[0].mxu0
    %v556 = vadd.f32 0.0, %v555
    %v557 = vpop.f32.mrb[0].mxu0
    %558 = vmatprep.mubr.f32.mxu0 0.0
    %559 = vmatmul.mubr.f32.gmra.mrb[0].mxu0 %v475
    %v560 = vpop.f32.mrb[0].mxu0
    %v561 = vadd.f32 0.0, %v560
    %v562 = vpop.f32.mrb[0].mxu0
    %563 = vmatprep.mubr.f32.mxu0 0.0
    %564 = vmatmul.mubr.f32.gmra.mrb[0].mxu0 %v478
    %v565 = vpop.f32.mrb[0].mxu0
    %v566 = vadd.f32 0.0, %v565
    %v567 = vpop.f32.mrb[0].mxu0
    %568 = vdwg.mxu0
    %v569 = vxor.u32 %v551, 2147483648
    %v570 = vxor.u32 %v556, 2147483648
    %v571 = vxor.u32 %v561, 2147483648
    %v572 = vxor.u32 %v566, 2147483648
    %v573 = vmul.f32 %v569, 1.442695
    %v574 = vpow.pop %v573
    %v575 = vmul.f32 %v570, 1.442695
    %v576 = vpow.pop %v575
    %v577 = vmul.f32 %v571, 1.442695
    %v578 = vpow.pop %v577
    %v579 = vmul.f32 %v572, 1.442695
    %v580 = vpow.pop %v579
    %v581 = vadd.f32 %v574, 1.0
    %v582 = vadd.f32 %v576, 1.0
    %v583 = vadd.f32 %v578, 1.0
    %v584 = vadd.f32 %v580, 1.0
    %v585 = vrcp.pop %v581
    %v586 = vmul.f32 1.0, %v585
    %v587 = vrcp.pop %v582
    %v588 = vmul.f32 1.0, %v587
    %v589 = vrcp.pop %v583
    %v590 = vmul.f32 1.0, %v589
    %v591 = vrcp.pop %v584
    %v592 = vmul.f32 1.0, %v591
    %v593 = vld [vmem:[%s4] sm:$0xff]
    %v594 = vld [vmem:[%s4 + $0x8] sm:$0xff]
    %v595 = vld [vmem:[%s4 + $0x10] sm:$0xff]
    %v596 = vld [vmem:[%s4 + $0x18] sm:$0xff]
    %v597 = vld [vmem:[%s5] sm:$0xff]
    %v598 = vld [vmem:[%s5 + $0x8] sm:$0xff]
    %v599 = vld [vmem:[%s5 + $0x10] sm:$0xff]
    %v600 = vld [vmem:[%s5 + $0x18] sm:$0xff]
    %602 = vset.pattern.permute.xlu0 0
    %603 = vperm.xlu0 %602, %v597
    %v604 = vpop.permute.xlu0 %603
    %607 = vset.pattern.permute.xlu0 0
    %608 = vperm.xlu0 %607, %v598
    %v609 = vpop.permute.xlu0 %608
    %612 = vset.pattern.permute.xlu0 0
    %613 = vperm.xlu0 %612, %v599
    %v614 = vpop.permute.xlu0 %613
    %617 = vset.pattern.permute.xlu0 0
    %618 = vperm.xlu0 %617, %v600
    %v619 = vpop.permute.xlu0 %618
    %v621 = vmul.f32 %v604, %v586
    %v622 = vmul.f32 %v609, %v588
    %v623 = vmul.f32 %v614, %v590
    %v624 = vmul.f32 %v619, %v592
    %v626 = vsel %vm388, %v593, 0
    %v629 = vsel %vm388, %v594, 0
    %v632 = vsel %vm388, %v595, 0
    %v635 = vsel %vm388, %v596, 0
    %637 = vmatprep.subr.mxu0 0.0
    %638 = vmatpush1.msra.mxu0 %v621
    %639 = vmatprep.subr.mxu0 0.0
    %640 = vmatpush1.msra.mxu0 %v622
    %641 = vmatprep.subr.mxu0 0.0
    %642 = vmatpush1.msra.mxu0 %v623
    %643 = vmatprep.subr.mxu0 0.0
    %644 = vmatpush1.msra.mxu0 %v624
    %645 = vmatprep.subr.mxu0 0.0
    %646 = vmatpush1.msra.mxu0 0.0
    %647 = vmatprep.subr.mxu0 0.0
    %648 = vmatpush1.msra.mxu0 0.0
    %649 = vmatprep.subr.mxu0 0.0
    %650 = vmatpush1.msra.mxu0 0.0
    %651 = vmatprep.subr.mxu0 0.0
    %652 = vmatpush1.msra.mxu0 0.0
    %653 = vmatprep.subr.mxu0 0.0
    %654 = vmatpush1.msra.mxu0 0.0
    %655 = vmatprep.subr.mxu0 0.0
    %656 = vmatpush1.msra.mxu0 0.0
    %657 = vmatprep.subr.mxu0 0.0
    %658 = vmatpush1.msra.mxu0 0.0
    %659 = vmatprep.subr.mxu0 0.0
    %660 = vmatpush1.msra.mxu0 0.0
    %661 = vmatprep.subr.mxu0 0.0
    %662 = vmatpush1.msra.mxu0 0.0
    %663 = vmatprep.subr.mxu0 0.0
    %664 = vmatpush1.msra.mxu0 0.0
    %665 = vmatprep.subr.mxu0 0.0
    %666 = vmatpush1.msra.mxu0 0.0
    %667 = vmatprep.subr.mxu0 0.0
    %668 = vmatpush1.msra.mxu0 0.0
    %669 = vmatprep.subr.mxu0 0.0
    %670 = vmatpush1.msra.mxu0 0.0
    %671 = vmatprep.subr.mxu0 0.0
    %672 = vmatpush1.msra.mxu0 0.0
    %673 = vmatprep.subr.mxu0 0.0
    %674 = vmatpush1.msra.mxu0 0.0
    %675 = vmatprep.subr.mxu0 0.0
    %676 = vmatpush1.msra.mxu0 0.0
    %677 = vmatprep.subr.mxu0 0.0
    %678 = vmatpush1.msra.mxu0 0.0
    %679 = vmatprep.subr.mxu0 0.0
    %680 = vmatpush1.msra.mxu0 0.0
    %681 = vmatprep.subr.mxu0 0.0
    %682 = vmatpush1.msra.mxu0 0.0
    %683 = vmatprep.subr.mxu0 0.0
    %684 = vmatpush1.msra.mxu0 0.0
    %685 = vmatprep.subr.mxu0 0.0
    %686 = vmatpush1.msra.mxu0 0.0
    %687 = vmatprep.subr.mxu0 0.0
    %688 = vmatpush1.msra.mxu0 0.0
    %689 = vmatprep.subr.mxu0 0.0
    %690 = vmatpush1.msra.mxu0 0.0
    %691 = vmatprep.subr.mxu0 0.0
    %692 = vmatpush1.msra.mxu0 0.0
    %693 = vmatprep.subr.mxu0 0.0
    %694 = vmatpush1.msra.mxu0 0.0
    %695 = vmatprep.subr.mxu0 0.0
    %696 = vmatpush1.msra.mxu0 0.0
    %697 = vmatprep.subr.mxu0 0.0
    %698 = vmatpush1.msra.mxu0 0.0
    %699 = vmatprep.subr.mxu0 0.0
    %700 = vmatpush1.msra.mxu0 0.0
    %701 = vmatprep.mubr.f32.mxu0 0.0
    %702 = vmatmul.mubr.f32.gmra.mrb[0].mxu0 %v626
    %v703 = vpop.f32.mrb[0].mxu0
    %v704 = vadd.f32 0.0, %v703
    %v705 = vpop.f32.mrb[0].mxu0
    %706 = vmatprep.mubr.f32.mxu0 0.0
    %707 = vmatmul.mubr.f32.gmra.mrb[0].mxu0 %v629
    %v708 = vpop.f32.mrb[0].mxu0
    %v709 = vadd.f32 0.0, %v708
    %v710 = vpop.f32.mrb[0].mxu0
    %711 = vmatprep.mubr.f32.mxu0 0.0
    %712 = vmatmul.mubr.f32.gmra.mrb[0].mxu0 %v632
    %v713 = vpop.f32.mrb[0].mxu0
    %v714 = vadd.f32 0.0, %v713
    %v715 = vpop.f32.mrb[0].mxu0
    %716 = vmatprep.mubr.f32.mxu0 0.0
    %717 = vmatmul.mubr.f32.gmra.mrb[0].mxu0 %v635
    %v718 = vpop.f32.mrb[0].mxu0
    %v719 = vadd.f32 0.0, %v718
    %v720 = vpop.f32.mrb[0].mxu0
    %721 = vdwg.mxu0
    %v722 = vsel %vm324, %v704, 0.0
    %v723 = vsel %vm324, %v709, 0.0
    %v724 = vsel %vm324, %v714, 0.0
    %v725 = vsel %vm324, %v719, 0.0
    %vm726 = vcmask 15360
    %v727 = vsel %vm726, %v722, 0.0
    %728 = vadd.xlane.f32.xlu0 %v727
    %v729 = vpop.xlane.xlu0 %728
    %v730 = vsel %vm726, %v723, 0.0
    %731 = vadd.xlane.f32.xlu0 %v730
    %v732 = vpop.xlane.xlu0 %731
    %v733 = vsel %vm726, %v724, 0.0
    %734 = vadd.xlane.f32.xlu0 %v733
    %v735 = vpop.xlane.xlu0 %734
    %v736 = vsel %vm726, %v725, 0.0
    %737 = vadd.xlane.f32.xlu0 %v736
    %v738 = vpop.xlane.xlu0 %737
    %v739 = vmul.f32 %v729, %v266
    %v740 = vmul.f32 %v729, %v267
    %v741 = vmul.f32 %v732, %v268
    %v742 = vmul.f32 %v732, %v269
    %v743 = vmul.f32 %v735, %v270
    %v744 = vmul.f32 %v735, %v271
    %v745 = vmul.f32 %v738, %v272
    %v746 = vmul.f32 %v738, %v273
    %v747 = vadd.f32 %v739, %v741
    %v748 = vadd.f32 %v747, %v743
    %v749 = vadd.f32 %v748, %v745
    %v750 = vrot.slane %v749, 4
    %v751 = vadd.f32 %v749, %v750
    %v752 = vrot.slane %v751, 2
    %v753 = vadd.f32 %v751, %v752
    %v754 = vrot.slane %v753, 1
    %v755 = vadd.f32 %v753, %v754
    %v756 = vadd.f32 %v740, %v742
    %v757 = vadd.f32 %v756, %v744
    %v758 = vadd.f32 %v757, %v746
    %v759 = vrot.slane %v758, 4
    %v760 = vadd.f32 %v758, %v759
    %v761 = vrot.slane %v760, 2
    %v762 = vadd.f32 %v760, %v761
    %v763 = vrot.slane %v762, 1
    %v764 = vadd.f32 %v762, %v763
    %v767 = vcombine.low %v755, %v764
    %v769 = vunpack.c.l.s4 1966171168
    %v770 = vunpack.c.0.s8 %v769
    %v771 = vlaneseq
    %v772 = vshrl.u32 %v771, 7
    %v773 = vsub.s32 %v770, %v772
    %v774 = vrot.slane %v767, %v773
    %v776 = vunpack.c.l.s4 1966171168
    %v777 = vunpack.c.0.s8 %v776
    %v778 = vlaneseq
    %v779 = vshrl.u32 %v778, 7
    %v780 = vsub.s32 %v777, %v779
    %v781 = vrot.slane %v774, %v780
    %783 = vst.msk [vmem:[#allocation3] ss:$2 sm:$0x3] %vm151, %v781
    %v784 = vld [vmem:[#allocation4 + $0x40] sm:$0xff]
    %v785 = vld [vmem:[#allocation4 + $0x48] sm:$0xff]
    %v786 = vld [vmem:[#allocation4 + $0x50] sm:$0xff]
    %v787 = vld [vmem:[#allocation4 + $0x58] sm:$0xff]
    %v788 = vld [vmem:[#allocation4 + $0x60] sm:$0xff]
    %v789 = vld [vmem:[#allocation4 + $0x68] sm:$0xff]
    %v790 = vld [vmem:[#allocation4 + $0x70] sm:$0xff]
    %v791 = vld [vmem:[#allocation4 + $0x78] sm:$0xff]
    %v792 = vsel %vm378, %v704, 0.0
    %v793 = vsel %vm378, %v709, 0.0
    %v794 = vsel %vm378, %v714, 0.0
    %v795 = vsel %vm378, %v719, 0.0
    %v796 = vsel %vm726, %v792, 0.0
    %797 = vadd.xlane.f32.xlu0 %v796
    %v798 = vpop.xlane.xlu0 %797
    %v799 = vsel %vm726, %v793, 0.0
    %800 = vadd.xlane.f32.xlu0 %v799
    %v801 = vpop.xlane.xlu0 %800
    %v802 = vsel %vm726, %v794, 0.0
    %803 = vadd.xlane.f32.xlu0 %v802
    %v804 = vpop.xlane.xlu0 %803
    %v805 = vsel %vm726, %v795, 0.0
    %806 = vadd.xlane.f32.xlu0 %v805
    %v807 = vpop.xlane.xlu0 %806
    %v808 = vmul.f32 %v798, %v784
    %v809 = vmul.f32 %v798, %v785
    %v810 = vmul.f32 %v801, %v786
    %v811 = vmul.f32 %v801, %v787
    %v812 = vmul.f32 %v804, %v788
    %v813 = vmul.f32 %v804, %v789
    %v814 = vmul.f32 %v807, %v790
    %v815 = vmul.f32 %v807, %v791
    %v816 = vadd.f32 %v808, %v810
    %v817 = vadd.f32 %v816, %v812
    %v818 = vadd.f32 %v817, %v814
    %v819 = vrot.slane %v818, 4
    %v820 = vadd.f32 %v818, %v819
    %v821 = vrot.slane %v820, 2
    %v822 = vadd.f32 %v820, %v821
    %v823 = vrot.slane %v822, 1
    %v824 = vadd.f32 %v822, %v823
    %v825 = vadd.f32 %v809, %v811
    %v826 = vadd.f32 %v825, %v813
    %v827 = vadd.f32 %v826, %v815
    %v828 = vrot.slane %v827, 4
    %v829 = vadd.f32 %v827, %v828
    %v830 = vrot.slane %v829, 2
    %v831 = vadd.f32 %v829, %v830
    %v832 = vrot.slane %v831, 1
    %v833 = vadd.f32 %v831, %v832
    %v836 = vcombine.low %v824, %v833
    %v838 = vunpack.c.l.s4 1966171168
    %v839 = vunpack.c.0.s8 %v838
    %v840 = vlaneseq
    %v841 = vshrl.u32 %v840, 7
    %v842 = vsub.s32 %v839, %v841
    %v843 = vrot.slane %v836, %v842
    %v845 = vunpack.c.l.s4 1966171168
    %v846 = vunpack.c.0.s8 %v845
    %v847 = vlaneseq
    %v848 = vshrl.u32 %v847, 7
    %v849 = vsub.s32 %v846, %v848
    %v850 = vrot.slane %v843, %v849
    %s852 = scalar_lea.vmem [#allocation3], 1
    %853 = vst.msk [vmem:[%s852] ss:$2 sm:$0x3] %vm151, %v850
    %v854 = vld [vmem:[#allocation3] sm:$0xf]
    %v855 = vadd.s32 %v265, 128
    %vm856 = vcmp.lt.s32.totalorder %v265, 0
    %v857 = vsub.s32 0, %v265
    %v858 = vsel %vm856, %v857, %v265
    %v859 = vshrl.u32 %v858, 4
    %v860 = vand.u32 %v858, 15
    %v861 = vsub.s32 0, %v860
    %v862 = vsel %vm856, %v861, %v860
    %vm863 = vcmp.lt.s32.totalorder %v855, 0
    %v864 = vsub.s32 0, %v855
    %v865 = vsel %vm863, %v864, %v855
    %v866 = vshrl.u32 %v865, 4
    %v867 = vand.u32 %v865, 15
    %v868 = vsub.s32 0, %v867
    %v869 = vsel %vm863, %v868, %v867
    %vm870 = vcmp.ne.s32.totalorder %v862, 0
    %vm871 = vcmp.ne.s32.totalorder %v869, 0
    %vm872 = vcmp.lt.s32.totalorder %v862, 0
    %vm873 = vcmp.lt.s32.totalorder %v869, 0
    %vm874 = vmand %vm872, %vm870
    %vm875 = vmand %vm873, %vm871
    %v876 = vadd.s32 %v862, 16
    %v877 = vadd.s32 %v869, 16
    %v878 = vsel %vm874, %v876, %v862
    %v879 = vsel %vm875, %v877, %v869
    %vm880 = vcmp.ge.s32.totalorder %v878, 1
    %vm881 = vcmp.ge.s32.totalorder %v879, 1
    %vm882 = vcmp.lt.s32.totalorder %v878, 15
    %vm883 = vcmp.lt.s32.totalorder %v879, 15
    %vm884 = vcmp.ge.s32.totalorder %v265, 16
    %vm885 = vcmp.ge.s32.totalorder %v855, 16
    %vm886 = vcmp.lt.s32.totalorder %v265, 240
    %vm887 = vcmp.lt.s32.totalorder %v855, 240
    %v890 = vunpack.c.l.s4 1983009808
    %v891 = vunpack.c.0.s8 %v890
    %v892 = vlaneseq
    %v893 = vshrl.u32 %v892, 7
    %v894 = vsub.s32 %v891, %v893
    %v895 = vrot.slane %v854, %v894
    %v896 = vcombine.high %v895, %v895
    %899 = vrot.lane.b32.xlu0 %v895, 1
    %v900 = vpop.permute.xlu0 %899
    %901 = vrot.lane.b32.xlu0 %v896, 1
    %v902 = vpop.permute.xlu0 %901
    %vm903 = vcmp.lt.s32.totalorder %v265, 1
    %v904 = vsel %vm903, %v900, %v902
    %v905 = vsel %vm903, %v902, %v900
    %v906 = vsel %vm880, %v905, 0.0
    %v907 = vsel %vm881, %v904, 0.0
    %908 = vrot.lane.b32.xlu0 %v895, 127
    %v909 = vpop.permute.xlu0 %908
    %910 = vrot.lane.b32.xlu0 %v896, 127
    %v911 = vpop.permute.xlu0 %910
    %vm912 = vcmp.lt.s32.totalorder %v265, 127
    %v913 = vsel %vm912, %v909, %v911
    %v914 = vsel %vm912, %v911, %v909
    %v915 = vsel %vm882, %v913, 0.0
    %v916 = vsel %vm883, %v914, 0.0
    %s917 = sld [smem:[#allocation8]]
    %v918 = vstv %s917
    %v919 = vmul.f32 %v918, %v906
    %v920 = vmul.f32 %v918, %v907
    %s921 = sld [smem:[#allocation8 + $0x1]]
    %v922 = vstv %s921
    %v923 = vmul.f32 %v922, %v854
    %v926 = vunpack.c.l.s4 1983009808
    %v927 = vunpack.c.0.s8 %v926
    %v928 = vlaneseq
    %v929 = vshrl.u32 %v928, 7
    %v930 = vsub.s32 %v927, %v929
    %v931 = vrot.slane %v923, %v930
    %v932 = vcombine.high %v931, %v931
    %v935 = vadd.f32 %v919, %v931
    %v936 = vadd.f32 %v920, %v932
    %s937 = sld [smem:[#allocation8 + $0x2]]
    %v938 = vstv %s937
    %v939 = vmul.f32 %v938, %v915
    %v940 = vmul.f32 %v938, %v916
    %v941 = vadd.f32 %v935, %v939
    %v942 = vadd.f32 %v936, %v940
    %s943 = sld [smem:[#allocation8 + $0x3]]
    %v944 = vstv %s943
    %v945 = vmul.f32 %v944, %v906
    %v946 = vmul.f32 %v944, %v907
    %s947 = sld [smem:[#allocation8 + $0x4]]
    %v948 = vstv %s947
    %v949 = vmul.f32 %v948, %v854
    %v952 = vunpack.c.l.s4 1983009808
    %v953 = vunpack.c.0.s8 %v952
    %v954 = vlaneseq
    %v955 = vshrl.u32 %v954, 7
    %v956 = vsub.s32 %v953, %v955
    %v957 = vrot.slane %v949, %v956
    %v958 = vcombine.high %v957, %v957
    %v961 = vadd.f32 %v945, %v957
    %v962 = vadd.f32 %v946, %v958
    %s963 = sld [smem:[#allocation8 + $0x5]]
    %v964 = vstv %s963
    %v965 = vmul.f32 %v964, %v915
    %v966 = vmul.f32 %v964, %v916
    %v967 = vadd.f32 %v961, %v965
    %v968 = vadd.f32 %v962, %v966
    %s969 = sld [smem:[#allocation8 + $0x6]]
    %v970 = vstv %s969
    %v971 = vmul.f32 %v970, %v906
    %v972 = vmul.f32 %v970, %v907
    %s973 = sld [smem:[#allocation8 + $0x7]]
    %v974 = vstv %s973
    %v975 = vmul.f32 %v974, %v854
    %v978 = vunpack.c.l.s4 1983009808
    %v979 = vunpack.c.0.s8 %v978
    %v980 = vlaneseq
    %v981 = vshrl.u32 %v980, 7
    %v982 = vsub.s32 %v979, %v981
    %v983 = vrot.slane %v975, %v982
    %v984 = vcombine.high %v983, %v983
    %v987 = vadd.f32 %v971, %v983
    %v988 = vadd.f32 %v972, %v984
    %s989 = sld [smem:[#allocation8 + $0x8]]
    %v990 = vstv %s989
    %v991 = vmul.f32 %v990, %v915
    %v992 = vmul.f32 %v990, %v916
    %v993 = vadd.f32 %v987, %v991
    %v994 = vadd.f32 %v988, %v992
    %995 = vrot.lane.b32.xlu0 %v941, 16
    %v996 = vpop.permute.xlu0 %995
    %997 = vrot.lane.b32.xlu0 %v942, 16
    %v998 = vpop.permute.xlu0 %997
    %vm999 = vcmp.lt.s32.totalorder %v265, 16
    %v1000 = vsel %vm999, %v996, %v998
    %v1001 = vsel %vm999, %v998, %v996
    %v1002 = vsel %vm884, %v1001, 0.0
    %v1003 = vsel %vm885, %v1000, 0.0
    %v1004 = vadd.f32 %v1002, %v967
    %v1005 = vadd.f32 %v1003, %v968
    %1006 = vrot.lane.b32.xlu0 %v993, 112
    %v1007 = vpop.permute.xlu0 %1006
    %1008 = vrot.lane.b32.xlu0 %v994, 112
    %v1009 = vpop.permute.xlu0 %1008
    %vm1010 = vcmp.lt.s32.totalorder %v265, 112
    %v1011 = vsel %vm1010, %v1007, %v1009
    %v1012 = vsel %vm1010, %v1009, %v1007
    %v1013 = vsel %vm886, %v1011, 0.0
    %v1014 = vsel %vm887, %v1012, 0.0
    %v1015 = vadd.f32 %v1004, %v1013
    %v1016 = vadd.f32 %v1005, %v1014
    %v1017 = vsel %vm219, %v1015, 0.0
    %v1018 = vsel %vm219, %v1016, 0.0
    %v1019 = vadd.f32 %v1017, %v1018
    %1020 = vadd.xlane.f32.xlu0 %v1019
    %v1021 = vpop.xlane.xlu0 %1020
    %v1022 = vrot.slane %v1021, 4
    %v1023 = vadd.f32 %v1021, %v1022
    %v1024 = vrot.slane %v1023, 2
    %v1025 = vadd.f32 %v1023, %v1024
    %v1026 = vrot.slane %v1025, 1
    %v1027 = vadd.f32 %v1025, %v1026
    %s1028 = vtos %v1027
    %v1029 = vrcp.pop 512.0
    %s1030 = vtos %v1029
    %s1031 = smul.f32 %s1028, %s1030
    %v1032 = vstv %s1031
    %v1033 = vsub.f32 %v1015, %v1032
    %v1034 = vsub.f32 %v1016, %v1032
    %v1035 = vmul.f32 %v1033, %v1033
    %v1036 = vmul.f32 %v1034, %v1034
    %v1037 = vsel %vm219, %v1035, 0.0
    %v1038 = vsel %vm219, %v1036, 0.0
    %v1039 = vadd.f32 %v1037, %v1038
    %1040 = vadd.xlane.f32.xlu0 %v1039
    %v1041 = vpop.xlane.xlu0 %1040
    %v1042 = vrot.slane %v1041, 4
    %v1043 = vadd.f32 %v1041, %v1042
    %v1044 = vrot.slane %v1043, 2
    %v1045 = vadd.f32 %v1043, %v1044
    %v1046 = vrot.slane %v1045, 1
    %v1047 = vadd.f32 %v1045, %v1046
    %s1048 = vtos %v1047
    %v1049 = vrcp.pop 512.0
    %s1050 = vtos %v1049
    %s1051 = smul.f32 %s1048, %s1050
    %s1052 = sadd.f32 %s1051, 1e-05
    %v1053 = vstv %s1052
    %v1054 = vrsqrt.pop %v1053
    %s1055 = vtos %v1054
    %s1056 = sld [smem:[#allocation9]]
    %s1057 = sld [smem:[#allocation9 + $0x1]]
    %s1058 = sld [smem:[#allocation9 + $0x2]]
    %s1059 = smul.f32 %s1055, %s1057
    %v1060 = vstv %s1059
    %v1061 = vmul.f32 %v1033, %v1060
    %v1062 = vmul.f32 %v1034, %v1060
    %v1063 = vstv %s1058
    %v1064 = vadd.f32 %v1061, %v1063
    %v1065 = vadd.f32 %v1062, %v1063
    %v1066 = vxor.u32 %v1064, 2147483648
    %v1067 = vxor.u32 %v1065, 2147483648
    %v1068 = vmul.f32 %v1066, 1.442695
    %v1069 = vpow.pop %v1068
    %v1070 = vmul.f32 %v1067, 1.442695
    %v1071 = vpow.pop %v1070
    %v1072 = vadd.f32 %v1069, 1.0
    %v1073 = vadd.f32 %v1071, 1.0
    %v1074 = vrcp.pop %v1072
    %v1075 = vmul.f32 1.0, %v1074
    %v1076 = vrcp.pop %v1073
    %v1077 = vmul.f32 1.0, %v1076
    %v1080 = vcombine.low %v1075, %v1077
    %v1082 = vunpack.c.l.s4 1983009808
    %v1083 = vunpack.c.0.s8 %v1082
    %v1084 = vlaneseq
    %v1085 = vshrl.u32 %v1084, 7
    %v1086 = vsub.s32 %v1083, %v1085
    %v1087 = vrot.slane %v1080, %v1086
    %v1089 = vmul.f32 %v854, %v1087
    %v1090 = vstv %s1056
    %v1091 = vmul.f32 %v1090, %v1089
    %v1092 = vld [vmem:[#allocation4] sm:$0xff]
    %v1093 = vld [vmem:[#allocation4 + $0x8] sm:$0xff]
    %v1094 = vld [vmem:[#allocation4 + $0x10] sm:$0xff]
    %v1095 = vld [vmem:[#allocation4 + $0x18] sm:$0xff]
    %v1096 = vld [vmem:[#allocation4 + $0x20] sm:$0xff]
    %v1097 = vld [vmem:[#allocation4 + $0x28] sm:$0xff]
    %v1098 = vld [vmem:[#allocation4 + $0x30] sm:$0xff]
    %v1099 = vld [vmem:[#allocation4 + $0x38] sm:$0xff]
    %v1102 = vunpack.c.l.s4 1983009808
    %v1103 = vunpack.c.0.s8 %v1102
    %v1104 = vlaneseq
    %v1105 = vshrl.u32 %v1104, 7
    %v1106 = vsub.s32 %v1103, %v1105
    %v1107 = vrot.slane %v1091, %v1106
    %v1108 = vcombine.high %v1107, %v1107
    %v1111 = vsel %vm276, %v1107, 0.0
    %v1112 = vsel %vm276, %v1108, 0.0
    %v1113 = vsel %vm219, %v1111, 0.0
    %v1114 = vrot.slane %v1113, 4
    %v1115 = vadd.f32 %v1113, %v1114
    %v1116 = vrot.slane %v1115, 2
    %v1117 = vadd.f32 %v1115, %v1116
    %v1118 = vrot.slane %v1117, 1
    %v1119 = vadd.f32 %v1117, %v1118
    %v1120 = vsel %vm219, %v1112, 0.0
    %v1121 = vrot.slane %v1120, 4
    %v1122 = vadd.f32 %v1120, %v1121
    %v1123 = vrot.slane %v1122, 2
    %v1124 = vadd.f32 %v1122, %v1123
    %v1125 = vrot.slane %v1124, 1
    %v1126 = vadd.f32 %v1124, %v1125
    %v1127 = vadd.f32 %v1092, %v1119
    %v1128 = vadd.f32 %v1093, %v1126
    %v1129 = vadd.f32 %v1094, %v1119
    %v1130 = vadd.f32 %v1095, %v1126
    %v1131 = vadd.f32 %v1096, %v1119
    %v1132 = vadd.f32 %v1097, %v1126
    %v1133 = vadd.f32 %v1098, %v1119
    %v1134 = vadd.f32 %v1099, %v1126
    %1135 = vst [vmem:[#allocation11] sm:$0xff] %v1127
    %1136 = vst [vmem:[#allocation11 + $0x8] sm:$0xff] %v1128
    %1137 = vst [vmem:[#allocation11 + $0x10] sm:$0xff] %v1129
    %1138 = vst [vmem:[#allocation11 + $0x18] sm:$0xff] %v1130
    %1139 = vst [vmem:[#allocation11 + $0x20] sm:$0xff] %v1131
    %1140 = vst [vmem:[#allocation11 + $0x28] sm:$0xff] %v1132
    %1141 = vst [vmem:[#allocation11 + $0x30] sm:$0xff] %v1133
    %1142 = vst [vmem:[#allocation11 + $0x38] sm:$0xff] %v1134
    %v1143 = vld [vmem:[#allocation4 + $0x40] sm:$0xff]
    %v1144 = vld [vmem:[#allocation4 + $0x48] sm:$0xff]
    %v1145 = vld [vmem:[#allocation4 + $0x50] sm:$0xff]
    %v1146 = vld [vmem:[#allocation4 + $0x58] sm:$0xff]
    %v1147 = vld [vmem:[#allocation4 + $0x60] sm:$0xff]
    %v1148 = vld [vmem:[#allocation4 + $0x68] sm:$0xff]
    %v1149 = vld [vmem:[#allocation4 + $0x70] sm:$0xff]
    %v1150 = vld [vmem:[#allocation4 + $0x78] sm:$0xff]
    %v1151 = vsel %vm341, %v1107, 0.0
    %v1152 = vsel %vm341, %v1108, 0.0
    %v1153 = vsel %vm219, %v1151, 0.0
    %v1154 = vrot.slane %v1153, 4
    %v1155 = vadd.f32 %v1153, %v1154
    %v1156 = vrot.slane %v1155, 2
    %v1157 = vadd.f32 %v1155, %v1156
    %v1158 = vrot.slane %v1157, 1
    %v1159 = vadd.f32 %v1157, %v1158
    %v1160 = vsel %vm219, %v1152, 0.0
    %v1161 = vrot.slane %v1160, 4
    %v1162 = vadd.f32 %v1160, %v1161
    %v1163 = vrot.slane %v1162, 2
    %v1164 = vadd.f32 %v1162, %v1163
    %v1165 = vrot.slane %v1164, 1
    %v1166 = vadd.f32 %v1164, %v1165
    %v1167 = vadd.f32 %v1143, %v1159
    %v1168 = vadd.f32 %v1144, %v1166
    %v1169 = vadd.f32 %v1145, %v1159
    %v1170 = vadd.f32 %v1146, %v1166
    %v1171 = vadd.f32 %v1147, %v1159
    %v1172 = vadd.f32 %v1148, %v1166
    %v1173 = vadd.f32 %v1149, %v1159
    %v1174 = vadd.f32 %v1150, %v1166
    %1175 = vst [vmem:[#allocation11 + $0x40] sm:$0xff] %v1167
    %1176 = vst [vmem:[#allocation11 + $0x48] sm:$0xff] %v1168
    %1177 = vst [vmem:[#allocation11 + $0x50] sm:$0xff] %v1169
    %1178 = vst [vmem:[#allocation11 + $0x58] sm:$0xff] %v1170
    %1179 = vst [vmem:[#allocation11 + $0x60] sm:$0xff] %v1171
    %1180 = vst [vmem:[#allocation11 + $0x68] sm:$0xff] %v1172
    %1181 = vst [vmem:[#allocation11 + $0x70] sm:$0xff] %v1173
    %1182 = vst [vmem:[#allocation11 + $0x78] sm:$0xff] %v1174
    %v1183 = vsel %vm219, %v1107, inf
    %v1184 = vsel %vm219, %v1108, inf
    %v1185 = vmin.f32 %v1183, %v1184
    %1186 = vmin.xlane.f32.xlu0 %v1185
    %v1187 = vpop.xlane.xlu0 %1186
    %v1188 = vsel %vm219, %v1107, -inf
    %v1189 = vsel %vm219, %v1108, -inf
    %v1190 = vmax.f32 %v1188, %v1189
    %1191 = vmax.xlane.f32.xlu0 %v1190
    %v1192 = vpop.xlane.xlu0 %1191
    %v1193 = vsub.f32 %v1192, %v1187
    %vm1194 = vcmp.eq.f32.partialorder %v1193, 0.0
    %v1195 = vsel %vm1194, 1e-05, %v1193
    %v1198 = vunpack.c.l.s4 269488144
    %v1199 = vunpack.c.0.s8 %v1198
    %v1200 = vlaneseq
    %v1201 = vshrl.u32 %v1200, 7
    %v1202 = vsub.s32 %v1199, %v1201
    %v1203 = vrot.slane %v1187, %v1202
    %v1205 = vsub.f32 %v1091, %v1203
    %v1208 = vunpack.c.l.s4 269488144
    %v1209 = vunpack.c.0.s8 %v1208
    %v1210 = vlaneseq
    %v1211 = vshrl.u32 %v1210, 7
    %v1212 = vsub.s32 %v1209, %v1211
    %v1213 = vrot.slane %v1195, %v1212
    %v1215 = vrcp.pop %v1213
    %v1216 = vmul.f32 %v1205, %v1215
    %1217 = vst [vmem:[#allocation12] sm:$0xf] %v1216
    // Predicated region
    $region46: #{tpu_custom_call.1} parent=1 // pred_check
      _
    $region47: #{tpu_custom_call.1} parent=1 // pred_check_branch
      %1219 = sbr.rel (0) target = $region49
    $region48: #{tpu_custom_call.1} parent=1 // pred_region
      %s1221 = ssub.s32 2048, 2048
      %1222 = vsyncadd [#allocation6], %s1221
      %s1223 = sshll.u32 [#allocation11], 4
      %s1224 = int_to_ptr.vmem [resolvable:$true] %s1223
      %1229 = dma.vmem_to_hbm [thread:$0]  %s1224, 2048, %s8, [#allocation6], 256, 256, 16
    $region49: #{tpu_custom_call.1} parent=1 // pred_fallthru
      _
    // Predicated region
    $region50: #{tpu_custom_call.1} parent=1 // pred_check
      _
    $region51: #{tpu_custom_call.1} parent=1 // pred_check_branch
      %1231 = sbr.rel (0) target = $region53
    $region52: #{tpu_custom_call.1} parent=1 // pred_region
      %s1233 = ssub.s32 64, 64
      %1234 = vsyncadd [#allocation13], %s1233
      %s1236 = sshll.u32 [#allocation12], 4
      %s1237 = int_to_ptr.vmem [resolvable:$true] %s1236
      %1239 = dma.vmem_to_hbm [thread:$0]  %s1237, 64, %s9, [#allocation13]
    $region53: #{tpu_custom_call.1} parent=1 // pred_fallthru
      _
    // Predicated region
    $region54: #{tpu_custom_call.1} parent=1 // pred_check
      _
    $region55: #{tpu_custom_call.1} parent=1 // pred_check_branch
      %1241 = sbr.rel (0) target = $region57
    $region56: #{tpu_custom_call.1} parent=1 // pred_region
      %1242 = dma.done [#allocation6], 2048
    $region57: #{tpu_custom_call.1} parent=1 // pred_fallthru
      _
    // Predicated region
    $region58: #{tpu_custom_call.1} parent=1 // pred_check
      _
    $region59: #{tpu_custom_call.1} parent=1 // pred_check_branch
      %1244 = sbr.rel (0) target = $region61
    $region60: #{tpu_custom_call.1} parent=1 // pred_region
      %1245 = dma.done [#allocation13], 64
    $region61: #{tpu_custom_call.1} parent=1 // pred_fallthru
      _
    %1246 = vsyncpa [#allocation5], 1
    %1247 = vsyncpa [#allocation6], 1
    %1248 = vsyncpa [#allocation13], 1
    %1249 = vsyncpa [#allocation7], 1
    %1250 = vsyncpa [#allocation10], 1

</llo_original>
